<compile_context>
chip_gen: v7x
topology: tpu7x:2x2x1
jax: 0.10.0
libtpu: 0.0.40
codegen_flags: <defaults>
</compile_context>

<pallas_src>
import functools

import jax
import jax.numpy as jnp
from jax.experimental import pallas as pl
from jax.experimental.pallas import tpu as pltpu


_LANE = 128   # last-dim (lane) granularity
_SUB = 8      # second-to-last-dim (sublane) granularity for f32


def _round_up(n, m):
    return ((n + m - 1) // m) * m


def _pad2d(a, rows, cols):
    pr, pc = rows - a.shape[0], cols - a.shape[1]
    if pr or pc:
        a = jnp.pad(a, ((0, pr), (0, pc)))
    return a


def _vmem_capacity_bytes():
    """Per-TensorCore physical VMEM; 64 MiB fallback fits every generation."""
    try:
        return int(pltpu.get_tpu_info().vmem_capacity_bytes)
    except Exception:
        return 64 << 20


def _pick_tile(dim, target, unit):
    """Largest multiple of `unit` that is <= target and divides `dim`."""
    t = max(unit, (min(dim, target) // unit) * unit)
    while dim % t:
        t -= unit
    return t


# ---------------------------------------------------------------------------
# Path A: fused, weight-resident kernel (weights fit in per-TC VMEM)
# ---------------------------------------------------------------------------
def _fused_kernel(
    x_ref, y_ref,
    wfc_ref, bfc_ref,
    we1_ref, be1_ref, we2_ref, be2_ref, we3_ref, be3_ref,
    wd1_ref, bd1_ref, wd2_ref, bd2_ref, wd3_ref, bd3_ref,
    yfc_ref, yae_ref,
    h_ref,
):
    """One batch tile of:
         d    = fcnet(x)
         e    = encoder(y)            (Dropout = identity)
         out  = decoder([d; e])       (shared decoder weights, run once)
         y_fc = out[:TB] ; y_ae = out[TB:]
    """
    tb = x_ref.shape[0]

    def linear(h, w_ref, b_ref, relu=False):
        # MXU matmul with f32 accumulation; bias-add / ReLU in f32 on the VPU.
        o = jnp.dot(h.astype(w_ref.dtype), w_ref[...],
                    preferred_element_type=jnp.float32) + b_ref[...]
        if relu:
            o = jnp.maximum(o, 0.0)
        return o

    # fcnet: Linear(in -> d); write straight into the stacked decoder input.
    h_ref[0:tb, :] = linear(x_ref[...], wfc_ref, bfc_ref).astype(h_ref.dtype)

    # encoder: Linear -> ReLU -> Linear -> ReLU -> Linear
    e = linear(y_ref[...], we1_ref, be1_ref, relu=True)
    e = linear(e, we2_ref, be2_ref, relu=True)
    h_ref[tb:2 * tb, :] = linear(e, we3_ref, be3_ref).astype(h_ref.dtype)

    # shared decoder, run ONCE on the 2*tb stacked rows.
    h = linear(h_ref[...], wd1_ref, bd1_ref, relu=True)
    h = linear(h, wd2_ref, bd2_ref, relu=True)
    out = linear(h, wd3_ref, bd3_ref)

    yfc_ref[...] = out[:tb].astype(yfc_ref.dtype)
    yae_ref[...] = out[tb:].astype(yae_ref.dtype)


# ---------------------------------------------------------------------------
# Path B: K-tiled weight-streaming linear (for the namesake 6000x3000 sizes)
# ---------------------------------------------------------------------------
def _linear_kernel(x_ref, w_ref, b_ref, o_ref, acc_ref, *, relu):
    @pl.when(pl.program_id(2) == 0)
    def _():
        acc_ref[...] = jnp.zeros_like(acc_ref)

    acc_ref[...] += jnp.dot(x_ref[...], w_ref[...],
                            preferred_element_type=jnp.float32)

    @pl.when(pl.program_id(2) == pl.num_programs(2) - 1)
    def _():
        o = acc_ref[...] + b_ref[...]
        if relu:
            o = jnp.maximum(o, 0.0)
        o_ref[...] = o.astype(o_ref.dtype)


def _streamed_linear(x, w, b, *, relu, out_dtype,
                     tm_target=512, tn_target=512, tk_target=512):
    """out = [relu](x @ w + b), grid=(M,N,K) with K 'arbitrary' + f32 scratch."""
    M, K = x.shape
    K2, N = w.shape
    assert K == K2
    tm = _pick_tile(M, tm_target, _SUB)
    tn = _pick_tile(N, tn_target, _LANE)
    tk = _pick_tile(K, tk_target, _LANE)
    grid = (M // tm, N // tn, K // tk)

    x_sz = jnp.dtype(x.dtype).itemsize
    w_sz = jnp.dtype(w.dtype).itemsize
    o_sz = jnp.dtype(out_dtype).itemsize
    vmem = (2 * tm * tk * x_sz + 2 * tk * tn * w_sz + 2 * tn * 4
            + 2 * tm * tn * o_sz + tm * tn * 4) + (4 << 20)
    vmem = int(min(max(vmem, 8 << 20), int(0.9 * _vmem_capacity_bytes())))

    cost = pl.CostEstimate(
        flops=int(2 * M * N * K), transcendentals=0,
        bytes_accessed=int(M * K * x_sz + (M // tm) * K * N * w_sz
                           + M * N * o_sz))

    return pl.pallas_call(
        functools.partial(_linear_kernel, relu=relu),
        out_shape=jax.ShapeDtypeStruct((M, N), out_dtype),
        grid=grid,
        in_specs=[
            pl.BlockSpec((tm, tk), lambda i, j, k: (i, k)),
            pl.BlockSpec((tk, tn), lambda i, j, k: (k, j)),
            pl.BlockSpec((1, tn), lambda i, j, k: (0, j)),
        ],
        out_specs=pl.BlockSpec((tm, tn), lambda i, j, k: (i, j)),
        scratch_shapes=[pltpu.VMEM((tm, tn), jnp.float32)],
        cost_estimate=cost,
        compiler_params=pltpu.CompilerParams(
            dimension_semantics=("parallel", "parallel", "arbitrary"),
            vmem_limit_bytes=vmem,
        ),
    )(x, w, b)


# ---------------------------------------------------------------------------
# Wrapper: padding, path selection, tiling
# ---------------------------------------------------------------------------
def conet_forward(x, y, params, *, batch_tile=256,
                  weight_dtype=jnp.bfloat16, force_streaming=False):
    """params: dict of weights (in,out) and biases (1,out). Returns (y_fc, y_ae).

    NOTE: with the default bf16 operands, activations are bf16 at every layer
    (not just weights); accumulation stays f32 on the MXU. Pass
    weight_dtype=jnp.float32 for an exact f32 reference match.
    """
    B, in_size = x.shape
    out_size = y.shape[1]
    d_size = params["wfc"].shape[1]
    h1 = params["we1"].shape[1]
    h2 = params["we2"].shape[1]

    # ---- pad feature dims to 128 lanes (lane-dense, unmasked stores) --------
    in_p = _round_up(in_size, _LANE)
    out_p = _round_up(out_size, _LANE)
    d_p = _round_up(d_size, _LANE)
    h1_p = _round_up(h1, _LANE)
    h2_p = _round_up(h2, _LANE)
    max_p = max(in_p, out_p, d_p, h1_p, h2_p)

    f32 = jnp.float32
    act_dtype = (jnp.bfloat16
                 if jnp.dtype(weight_dtype) == jnp.dtype(jnp.bfloat16) else f32)
    w_sz = jnp.dtype(weight_dtype).itemsize
    a_sz = jnp.dtype(act_dtype).itemsize

    weight_bytes = w_sz * (in_p * d_p + out_p * h1_p + h1_p * h2_p + h2_p * d_p
                           + d_p * h2_p + h2_p * h1_p + h1_p * out_p)
    bias_bytes = 4 * (2 * d_p + 2 * h1_p + 2 * h2_p + out_p)

    capacity = _vmem_capacity_bytes()
    budget = int(0.78 * capacity)          # per-TC, headroom for internal scratch

    def fused_footprint(tb):
        streamed = 2 * tb * (in_p + out_p) * a_sz + 2 * 2 * tb * out_p * 4
        scratch = 2 * tb * d_p * a_sz               # stacked decoder input
        live = 4 * (2 * tb) * max_p * 4             # live f32 intermediates
        return weight_bytes + bias_bytes + streamed + scratch + live + (2 << 20)

    # ---- batch tile for the fused path ---------------------------------------
    tb = _round_up(min(batch_tile, _round_up(B, _SUB)), _SUB)
    # prefer >= 2 grid steps (DMA pipelining; v7x megacore sharding of batch)
    if B > _SUB and _round_up(B, tb) // tb < 2:
        tb = _round_up(pl.cdiv(B, 2), _SUB)
    while tb > _SUB and fused_footprint(tb) > budget:
        tb = _round_up(tb // 2, _SUB)

    use_streaming = force_streaming or fused_footprint(tb) > budget

    # ---- padded weights / biases (biases stay f32) ---------------------------
    def wpad(name, r, c):
        return _pad2d(params[name], r, c).astype(weight_dtype)

    def bpad(name, c):
        return _pad2d(params[name], 1, c).astype(f32)

    W = dict(
        wfc=wpad("wfc", in_p, d_p), bfc=bpad("bfc", d_p),
        we1=wpad("we1", out_p, h1_p), be1=bpad("be1", h1_p),
        we2=wpad("we2", h1_p, h2_p), be2=bpad("be2", h2_p),
        we3=wpad("we3", h2_p, d_p), be3=bpad("be3", d_p),
        wd1=wpad("wd1", d_p, h2_p), bd1=bpad("bd1", h2_p),
        wd2=wpad("wd2", h2_p, h1_p), bd2=bpad("bd2", h1_p),
        wd3=wpad("wd3", h1_p, out_p), bd3=bpad("bd3", out_p),
    )

    # =========================================================================
    # Path B: weights too large for VMEM -> per-layer K-tiled streaming kernels
    # =========================================================================
    if use_streaming:
        tm_target = min(512, _round_up(B, _SUB))
        b_p = _round_up(B, tm_target)
        xp = _pad2d(x.astype(f32), b_p, in_p).astype(act_dtype)
        yp = _pad2d(y.astype(f32), b_p, out_p).astype(act_dtype)

        lin = functools.partial(_streamed_linear, tm_target=tm_target)
        d = lin(xp, W["wfc"], W["bfc"], relu=False, out_dtype=act_dtype)
        e = lin(yp, W["we1"], W["be1"], relu=True, out_dtype=act_dtype)
        e = lin(e, W["we2"], W["be2"], relu=True, out_dtype=act_dtype)
        e = lin(e, W["we3"], W["be3"], relu=False, out_dtype=act_dtype)
        # shared decoder: stack rows so each decoder weight streams from HBM once
        h = jnp.concatenate([d, e], axis=0)
        h = lin(h, W["wd1"], W["bd1"], relu=True, out_dtype=act_dtype)
        h = lin(h, W["wd2"], W["bd2"], relu=True, out_dtype=act_dtype)
        out = lin(h, W["wd3"], W["bd3"], relu=False, out_dtype=f32)
        return out[:B, :out_size], out[b_p:b_p + B, :out_size]

    # =========================================================================
    # Path A: fused weight-resident kernel, batch streamed on a "parallel" grid
    # =========================================================================
    b_p = _round_up(B, tb)
    n_b = b_p // tb
    xp = _pad2d(x.astype(f32), b_p, in_p).astype(act_dtype)
    yp = _pad2d(y.astype(f32), b_p, out_p).astype(act_dtype)

    args = (xp, yp,
            W["wfc"], W["bfc"], W["we1"], W["be1"], W["we2"], W["be2"],
            W["we3"], W["be3"], W["wd1"], W["bd1"], W["wd2"], W["bd2"],
            W["wd3"], W["bd3"])

    def batch_spec(cols):
        return pl.BlockSpec((tb, cols), lambda i: (i, 0))

    def resident_spec(shape, single_buffer):
        # constant block index -> held resident in VMEM across grid steps;
        # single-buffering halves its allocation (it is never re-DMA'd).
        if single_buffer:
            return pl.BlockSpec(shape, lambda i: (0, 0),
                                pipeline_mode=pl.Buffered(1))
        return pl.BlockSpec(shape, lambda i: (0, 0))

    out_specs = (batch_spec(out_p), batch_spec(out_p))
    out_shape = (jax.ShapeDtypeStruct((b_p, out_p), f32),
                 jax.ShapeDtypeStruct((b_p, out_p), f32))

    flops = 2 * b_p * (in_p * d_p + out_p * h1_p + h1_p * h2_p + h2_p * d_p
                       + 2 * (d_p * h2_p + h2_p * h1_p + h1_p * out_p))
    io_bytes = (int(xp.size) + int(yp.size)) * a_sz + 2 * b_p * out_p * 4
    cost = pl.CostEstimate(flops=int(flops), transcendentals=0,
                           bytes_accessed=int(weight_bytes + bias_bytes + io_bytes))

    def run(single_buffer):
        in_specs = [batch_spec(in_p), batch_spec(out_p)]
        in_specs += [resident_spec(a.shape, single_buffer) for a in args[2:]]
        extra = 0 if single_buffer else (weight_bytes + bias_bytes)
        vmem_limit = int(min(max(fused_footprint(tb) + extra, 16 << 20),
                             int(0.9 * capacity)))
        return pl.pallas_call(
            _fused_kernel,
            out_shape=out_shape,
            grid=(n_b,),
            in_specs=in_specs,
            out_specs=out_specs,
            scratch_shapes=[pltpu.VMEM((2 * tb, d_p), act_dtype)],
            cost_estimate=cost,
            compiler_params=pltpu.CompilerParams(
                dimension_semantics=("parallel",),
                vmem_limit_bytes=vmem_limit,
            ),
        )(*args)

    try:
        y_fc, y_ae = run(single_buffer=True)
    except Exception:
        # Fallback if this JAX version rejects pipeline_mode=pl.Buffered(1).
        y_fc, y_ae = run(single_buffer=False)

    return y_fc[:B, :out_size], y_ae[:B, :out_size]


# ---------------------------------------------------------------------------
# Parameter init + pure-JAX reference (eval-mode dropout = identity)
# ---------------------------------------------------------------------------
def init_params(key, in_size, out_size, d_size, h1, h2):
    def lin(k, fan_in, fan_out):
        kw, kb = jax.random.split(k)
        bound = 1.0 / jnp.sqrt(fan_in)
        w = jax.random.uniform(kw, (fan_in, fan_out), jnp.float32, -bound, bound)
        b = jax.random.uniform(kb, (1, fan_out), jnp.float32, -bound, bound)
        return w, b

    keys = jax.random.split(key, 7)
    p = {}
    p["wfc"], p["bfc"] = lin(keys[0], in_size, d_size)          # fcnet
    p["we1"], p["be1"] = lin(keys[1], out_size, h1)             # encoder
    p["we2"], p["be2"] = lin(keys[2], h1, h2)
    p["we3"], p["be3"] = lin(keys[3], h2, d_size)
    p["wd1"], p["bd1"] = lin(keys[4], d_size, h2)               # decoder
    p["wd2"], p["bd2"] = lin(keys[5], h2, h1)
    p["wd3"], p["bd3"] = lin(keys[6], h1, out_size)
    return p


def reference_forward(x, y, p):
    def lin(h, w, b, relu=False):
        o = h @ w + b
        return jnp.maximum(o, 0.0) if relu else o

    def decoder(h):
        h = lin(h, p["wd1"], p["bd1"], relu=True)
        h = lin(h, p["wd2"], p["bd2"], relu=True)
        return lin(h, p["wd3"], p["bd3"])

    d = lin(x, p["wfc"], p["bfc"])
    y_fc = decoder(d)
    e = lin(y, p["we1"], p["be1"], relu=True)
    e = lin(e, p["we2"], p["be2"], relu=True)
    e = lin(e, p["we3"], p["be3"])
    y_ae = decoder(e)
    return y_fc, y_ae


if __name__ == "__main__":
    # Small shapes consistent with the module signature.
    B = 8
    in_size, out_size = 16, 24
    d_size, h1, h2 = 32, 48, 40       # hidden_d3_size is unused by the module
    # dropout_rate_AE only matters in training mode (identity here).

    key = jax.random.PRNGKey(0)
    kx, ky, kp = jax.random.split(key, 3)
    x = jax.random.normal(kx, (B, in_size), jnp.float32)
    y = jax.random.normal(ky, (B, out_size), jnp.float32)
    params = init_params(kp, in_size, out_size, d_size, h1, h2)

    ref_fc, ref_ae = reference_forward(x, y, params)

    # 1) f32 weight-resident fused path: tight comparison.
    y_fc, y_ae = conet_forward(x, y, params, weight_dtype=jnp.float32)
    jax.block_until_ready((y_fc, y_ae))
    assert y_fc.shape == ref_fc.shape and y_ae.shape == ref_ae.shape
    assert jnp.allclose(y_fc, ref_fc, atol=1e-5, rtol=1e-5), "f32 y_fc mismatch"
    assert jnp.allclose(y_ae, ref_ae, atol=1e-5, rtol=1e-5), "f32 y_ae mismatch"

    # 2) default bf16 operands (f32 MXU accumulation): loose tolerance.
    y_fc16, y_ae16 = conet_forward(x, y, params)
    jax.block_until_ready((y_fc16, y_ae16))
    assert float(jnp.max(jnp.abs(y_fc16 - ref_fc))) < 0.25, "bf16 y_fc mismatch"
    assert float(jnp.max(jnp.abs(y_ae16 - ref_ae))) < 0.25, "bf16 y_ae mismatch"

    # 3) weight-streaming path (auto-selected at the namesake 6000/3000 sizes).
    y_fcs, y_aes = conet_forward(x, y, params, weight_dtype=jnp.float32,
                                 force_streaming=True)
    jax.block_until_ready((y_fcs, y_aes))
    assert jnp.allclose(y_fcs, ref_fc, atol=1e-5, rtol=1e-5), "streamed y_fc mismatch"
    assert jnp.allclose(y_aes, ref_ae, atol=1e-5, rtol=1e-5), "streamed y_ae mismatch"

    print("KERNEL_OK")
</pallas_src>

<mosaic_0001>
module attributes {stable_mosaic.version = 11 : i64} {
  func.func @_fused_kernel(%arg0: i32, %arg1: memref<8x128xf32, #tpu.memory_space<vmem>>, %arg2: memref<8x128xf32, #tpu.memory_space<vmem>>, %arg3: memref<128x128xf32, #tpu.memory_space<vmem>>, %arg4: memref<1x128xf32, #tpu.memory_space<vmem>>, %arg5: memref<128x128xf32, #tpu.memory_space<vmem>>, %arg6: memref<1x128xf32, #tpu.memory_space<vmem>>, %arg7: memref<128x128xf32, #tpu.memory_space<vmem>>, %arg8: memref<1x128xf32, #tpu.memory_space<vmem>>, %arg9: memref<128x128xf32, #tpu.memory_space<vmem>>, %arg10: memref<1x128xf32, #tpu.memory_space<vmem>>, %arg11: memref<128x128xf32, #tpu.memory_space<vmem>>, %arg12: memref<1x128xf32, #tpu.memory_space<vmem>>, %arg13: memref<128x128xf32, #tpu.memory_space<vmem>>, %arg14: memref<1x128xf32, #tpu.memory_space<vmem>>, %arg15: memref<128x128xf32, #tpu.memory_space<vmem>>, %arg16: memref<1x128xf32, #tpu.memory_space<vmem>>, %arg17: memref<8x128xf32, #tpu.memory_space<vmem>>, %arg18: memref<8x128xf32, #tpu.memory_space<vmem>>, %arg19: memref<16x128xf32, #tpu.memory_space<vmem>>) attributes {dimension_semantics = [#tpu.dimension_semantics<parallel>], iteration_bounds = array<i64: 1>, scalar_prefetch = 0 : i64, scratch_operands = 1 : i64, tpu.core_type = #tpu.core_type<tc>, window_params = [{transform_indices = @transform_0, window_bounds = array<i64: 8, 128>}, {transform_indices = @transform_1, window_bounds = array<i64: 8, 128>}, {pipeline_mode = #tpu.pipeline_mode<synchronous>, transform_indices = @transform_2, window_bounds = array<i64: 128, 128>}, {pipeline_mode = #tpu.pipeline_mode<synchronous>, transform_indices = @transform_3, window_bounds = array<i64: 1, 128>}, {pipeline_mode = #tpu.pipeline_mode<synchronous>, transform_indices = @transform_4, window_bounds = array<i64: 128, 128>}, {pipeline_mode = #tpu.pipeline_mode<synchronous>, transform_indices = @transform_5, window_bounds = array<i64: 1, 128>}, {pipeline_mode = #tpu.pipeline_mode<synchronous>, transform_indices = @transform_6, window_bounds = array<i64: 128, 128>}, {pipeline_mode = #tpu.pipeline_mode<synchronous>, transform_indices = @transform_7, window_bounds = array<i64: 1, 128>}, {pipeline_mode = #tpu.pipeline_mode<synchronous>, transform_indices = @transform_8, window_bounds = array<i64: 128, 128>}, {pipeline_mode = #tpu.pipeline_mode<synchronous>, transform_indices = @transform_9, window_bounds = array<i64: 1, 128>}, {pipeline_mode = #tpu.pipeline_mode<synchronous>, transform_indices = @transform_10, window_bounds = array<i64: 128, 128>}, {pipeline_mode = #tpu.pipeline_mode<synchronous>, transform_indices = @transform_11, window_bounds = array<i64: 1, 128>}, {pipeline_mode = #tpu.pipeline_mode<synchronous>, transform_indices = @transform_12, window_bounds = array<i64: 128, 128>}, {pipeline_mode = #tpu.pipeline_mode<synchronous>, transform_indices = @transform_13, window_bounds = array<i64: 1, 128>}, {pipeline_mode = #tpu.pipeline_mode<synchronous>, transform_indices = @transform_14, window_bounds = array<i64: 128, 128>}, {pipeline_mode = #tpu.pipeline_mode<synchronous>, transform_indices = @transform_15, window_bounds = array<i64: 1, 128>}, {transform_indices = @transform_16, window_bounds = array<i64: 8, 128>}, {transform_indices = @transform_17, window_bounds = array<i64: 8, 128>}]} {
    %c0 = arith.constant 0 : index
    %c0_0 = arith.constant 0 : index
    %0 = vector.load %arg1[%c0, %c0_0] : memref<8x128xf32, #tpu.memory_space<vmem>>, vector<8x128xf32>
    %c0_1 = arith.constant 0 : index
    %c0_2 = arith.constant 0 : index
    %1 = vector.load %arg3[%c0_1, %c0_2] : memref<128x128xf32, #tpu.memory_space<vmem>>, vector<128x128xf32>
    %cst = arith.constant dense<0.000000e+00> : vector<8x128xf32>
    %2 = tpu.matmul %0, %1, %cst {dimension_numbers = #tpu.dot_dimension_numbers<[1], [0], [0], [1], [0, 0, 1, 1], [], []>} : vector<8x128xf32>, vector<128x128xf32>, vector<8x128xf32> -> vector<8x128xf32>
    %c0_3 = arith.constant 0 : index
    %c0_4 = arith.constant 0 : index
    %3 = vector.load %arg4[%c0_3, %c0_4] : memref<1x128xf32, #tpu.memory_space<vmem>>, vector<1x128xf32>
    %4 = vector.broadcast %3 : vector<1x128xf32> to vector<8x128xf32>
    %5 = arith.addf %2, %4 : vector<8x128xf32>
    %c0_5 = arith.constant 0 : index
    %c0_6 = arith.constant 0 : index
    %6 = vector.load %arg19[%c0_5, %c0_6] : memref<16x128xf32, #tpu.memory_space<vmem>>, vector<8x128xf32>
    tpu.vector_store %arg19[%c0_5, %c0_6], %5 {strides = array<i32>} : memref<16x128xf32, #tpu.memory_space<vmem>>, vector<8x128xf32>,
    %c0_7 = arith.constant 0 : index
    %c0_8 = arith.constant 0 : index
    %7 = vector.load %arg2[%c0_7, %c0_8] : memref<8x128xf32, #tpu.memory_space<vmem>>, vector<8x128xf32>
    %c0_9 = arith.constant 0 : index
    %c0_10 = arith.constant 0 : index
    %8 = vector.load %arg5[%c0_9, %c0_10] : memref<128x128xf32, #tpu.memory_space<vmem>>, vector<128x128xf32>
    %cst_11 = arith.constant dense<0.000000e+00> : vector<8x128xf32>
    %9 = tpu.matmul %7, %8, %cst_11 {dimension_numbers = #tpu.dot_dimension_numbers<[1], [0], [0], [1], [0, 0, 1, 1], [], []>} : vector<8x128xf32>, vector<128x128xf32>, vector<8x128xf32> -> vector<8x128xf32>
    %c0_12 = arith.constant 0 : index
    %c0_13 = arith.constant 0 : index
    %10 = vector.load %arg6[%c0_12, %c0_13] : memref<1x128xf32, #tpu.memory_space<vmem>>, vector<1x128xf32>
    %11 = vector.broadcast %10 : vector<1x128xf32> to vector<8x128xf32>
    %12 = arith.addf %9, %11 : vector<8x128xf32>
    %cst_14 = arith.constant 0.000000e+00 : f32
    %13 = vector.broadcast %cst_14 : f32 to vector<8x128xf32>
    %14 = arith.maximumf %12, %13 : vector<8x128xf32>
    %c0_15 = arith.constant 0 : index
    %c0_16 = arith.constant 0 : index
    %15 = vector.load %arg7[%c0_15, %c0_16] : memref<128x128xf32, #tpu.memory_space<vmem>>, vector<128x128xf32>
    %cst_17 = arith.constant dense<0.000000e+00> : vector<8x128xf32>
    %16 = tpu.matmul %14, %15, %cst_17 {dimension_numbers = #tpu.dot_dimension_numbers<[1], [0], [0], [1], [0, 0, 1, 1], [], []>} : vector<8x128xf32>, vector<128x128xf32>, vector<8x128xf32> -> vector<8x128xf32>
    %c0_18 = arith.constant 0 : index
    %c0_19 = arith.constant 0 : index
    %17 = vector.load %arg8[%c0_18, %c0_19] : memref<1x128xf32, #tpu.memory_space<vmem>>, vector<1x128xf32>
    %18 = vector.broadcast %17 : vector<1x128xf32> to vector<8x128xf32>
    %19 = arith.addf %16, %18 : vector<8x128xf32>
    %cst_20 = arith.constant 0.000000e+00 : f32
    %20 = vector.broadcast %cst_20 : f32 to vector<8x128xf32>
    %21 = arith.maximumf %19, %20 : vector<8x128xf32>
    %c0_21 = arith.constant 0 : index
    %c0_22 = arith.constant 0 : index
    %22 = vector.load %arg9[%c0_21, %c0_22] : memref<128x128xf32, #tpu.memory_space<vmem>>, vector<128x128xf32>
    %cst_23 = arith.constant dense<0.000000e+00> : vector<8x128xf32>
    %23 = tpu.matmul %21, %22, %cst_23 {dimension_numbers = #tpu.dot_dimension_numbers<[1], [0], [0], [1], [0, 0, 1, 1], [], []>} : vector<8x128xf32>, vector<128x128xf32>, vector<8x128xf32> -> vector<8x128xf32>
    %c0_24 = arith.constant 0 : index
    %c0_25 = arith.constant 0 : index
    %24 = vector.load %arg10[%c0_24, %c0_25] : memref<1x128xf32, #tpu.memory_space<vmem>>, vector<1x128xf32>
    %25 = vector.broadcast %24 : vector<1x128xf32> to vector<8x128xf32>
    %26 = arith.addf %23, %25 : vector<8x128xf32>
    %c8 = arith.constant 8 : index
    %c0_26 = arith.constant 0 : index
    %27 = vector.load %arg19[%c8, %c0_26] : memref<16x128xf32, #tpu.memory_space<vmem>>, vector<8x128xf32>
    tpu.vector_store %arg19[%c8, %c0_26], %26 {strides = array<i32>} : memref<16x128xf32, #tpu.memory_space<vmem>>, vector<8x128xf32>,
    %c0_27 = arith.constant 0 : index
    %c0_28 = arith.constant 0 : index
    %28 = vector.load %arg19[%c0_27, %c0_28] : memref<16x128xf32, #tpu.memory_space<vmem>>, vector<16x128xf32>
    %c0_29 = arith.constant 0 : index
    %c0_30 = arith.constant 0 : index
    %29 = vector.load %arg11[%c0_29, %c0_30] : memref<128x128xf32, #tpu.memory_space<vmem>>, vector<128x128xf32>
    %cst_31 = arith.constant dense<0.000000e+00> : vector<16x128xf32>
    %30 = tpu.matmul %28, %29, %cst_31 {dimension_numbers = #tpu.dot_dimension_numbers<[1], [0], [0], [1], [0, 0, 1, 1], [], []>} : vector<16x128xf32>, vector<128x128xf32>, vector<16x128xf32> -> vector<16x128xf32>
    %c0_32 = arith.constant 0 : index
    %c0_33 = arith.constant 0 : index
    %31 = vector.load %arg12[%c0_32, %c0_33] : memref<1x128xf32, #tpu.memory_space<vmem>>, vector<1x128xf32>
    %32 = vector.broadcast %31 : vector<1x128xf32> to vector<16x128xf32>
    %33 = arith.addf %30, %32 : vector<16x128xf32>
    %cst_34 = arith.constant 0.000000e+00 : f32
    %34 = vector.broadcast %cst_34 : f32 to vector<16x128xf32>
    %35 = arith.maximumf %33, %34 : vector<16x128xf32>
    %c0_35 = arith.constant 0 : index
    %c0_36 = arith.constant 0 : index
    %36 = vector.load %arg13[%c0_35, %c0_36] : memref<128x128xf32, #tpu.memory_space<vmem>>, vector<128x128xf32>
    %cst_37 = arith.constant dense<0.000000e+00> : vector<16x128xf32>
    %37 = tpu.matmul %35, %36, %cst_37 {dimension_numbers = #tpu.dot_dimension_numbers<[1], [0], [0], [1], [0, 0, 1, 1], [], []>} : vector<16x128xf32>, vector<128x128xf32>, vector<16x128xf32> -> vector<16x128xf32>
    %c0_38 = arith.constant 0 : index
    %c0_39 = arith.constant 0 : index
    %38 = vector.load %arg14[%c0_38, %c0_39] : memref<1x128xf32, #tpu.memory_space<vmem>>, vector<1x128xf32>
    %39 = vector.broadcast %38 : vector<1x128xf32> to vector<16x128xf32>
    %40 = arith.addf %37, %39 : vector<16x128xf32>
    %cst_40 = arith.constant 0.000000e+00 : f32
    %41 = vector.broadcast %cst_40 : f32 to vector<16x128xf32>
    %42 = arith.maximumf %40, %41 : vector<16x128xf32>
    %c0_41 = arith.constant 0 : index
    %c0_42 = arith.constant 0 : index
    %43 = vector.load %arg15[%c0_41, %c0_42] : memref<128x128xf32, #tpu.memory_space<vmem>>, vector<128x128xf32>
    %cst_43 = arith.constant dense<0.000000e+00> : vector<16x128xf32>
    %44 = tpu.matmul %42, %43, %cst_43 {dimension_numbers = #tpu.dot_dimension_numbers<[1], [0], [0], [1], [0, 0, 1, 1], [], []>} : vector<16x128xf32>, vector<128x128xf32>, vector<16x128xf32> -> vector<16x128xf32>
    %c0_44 = arith.constant 0 : index
    %c0_45 = arith.constant 0 : index
    %45 = vector.load %arg16[%c0_44, %c0_45] : memref<1x128xf32, #tpu.memory_space<vmem>>, vector<1x128xf32>
    %46 = vector.broadcast %45 : vector<1x128xf32> to vector<16x128xf32>
    %47 = arith.addf %44, %46 : vector<16x128xf32>
    %48 = vector.extract_strided_slice %47 {offsets = [0, 0], sizes = [8, 128], strides = [1, 1]} : vector<16x128xf32> to vector<8x128xf32>
    %c0_46 = arith.constant 0 : index
    %c0_47 = arith.constant 0 : index
    %49 = vector.load %arg17[%c0_46, %c0_47] : memref<8x128xf32, #tpu.memory_space<vmem>>, vector<8x128xf32>
    tpu.vector_store %arg17[%c0_46, %c0_47], %48 {strides = array<i32>} : memref<8x128xf32, #tpu.memory_space<vmem>>, vector<8x128xf32>,
    %50 = vector.extract_strided_slice %47 {offsets = [8, 0], sizes = [8, 128], strides = [1, 1]} : vector<16x128xf32> to vector<8x128xf32>
    %c0_48 = arith.constant 0 : index
    %c0_49 = arith.constant 0 : index
    %51 = vector.load %arg18[%c0_48, %c0_49] : memref<8x128xf32, #tpu.memory_space<vmem>>, vector<8x128xf32>
    tpu.vector_store %arg18[%c0_48, %c0_49], %50 {strides = array<i32>} : memref<8x128xf32, #tpu.memory_space<vmem>>, vector<8x128xf32>,
    return
  }
  func.func @transform_0(%arg0: i32) -> (i32, i32) {
    %c0_i32 = arith.constant 0 : i32
    %c0_i32_0 = arith.constant 0 : i32
    return %arg0, %c0_i32 : i32, i32
  }
  func.func @transform_1(%arg0: i32) -> (i32, i32) {
    %c0_i32 = arith.constant 0 : i32
    %c0_i32_0 = arith.constant 0 : i32
    return %arg0, %c0_i32 : i32, i32
  }
  func.func @transform_2(%arg0: i32) -> (i32, i32) {
    %c0_i32 = arith.constant 0 : i32
    %c0_i32_0 = arith.constant 0 : i32
    %c0_i32_1 = arith.constant 0 : i32
    return %c0_i32, %c0_i32_0 : i32, i32
  }
  func.func @transform_3(%arg0: i32) -> (i32, i32) {
    %c0_i32 = arith.constant 0 : i32
    %c0_i32_0 = arith.constant 0 : i32
    %c0_i32_1 = arith.constant 0 : i32
    return %c0_i32, %c0_i32_0 : i32, i32
  }
  func.func @transform_4(%arg0: i32) -> (i32, i32) {
    %c0_i32 = arith.constant 0 : i32
    %c0_i32_0 = arith.constant 0 : i32
    %c0_i32_1 = arith.constant 0 : i32
    return %c0_i32, %c0_i32_0 : i32, i32
  }
  func.func @transform_5(%arg0: i32) -> (i32, i32) {
    %c0_i32 = arith.constant 0 : i32
    %c0_i32_0 = arith.constant 0 : i32
    %c0_i32_1 = arith.constant 0 : i32
    return %c0_i32, %c0_i32_0 : i32, i32
  }
  func.func @transform_6(%arg0: i32) -> (i32, i32) {
    %c0_i32 = arith.constant 0 : i32
    %c0_i32_0 = arith.constant 0 : i32
    %c0_i32_1 = arith.constant 0 : i32
    return %c0_i32, %c0_i32_0 : i32, i32
  }
  func.func @transform_7(%arg0: i32) -> (i32, i32) {
    %c0_i32 = arith.constant 0 : i32
    %c0_i32_0 = arith.constant 0 : i32
    %c0_i32_1 = arith.constant 0 : i32
    return %c0_i32, %c0_i32_0 : i32, i32
  }
  func.func @transform_8(%arg0: i32) -> (i32, i32) {
    %c0_i32 = arith.constant 0 : i32
    %c0_i32_0 = arith.constant 0 : i32
    %c0_i32_1 = arith.constant 0 : i32
    return %c0_i32, %c0_i32_0 : i32, i32
  }
  func.func @transform_9(%arg0: i32) -> (i32, i32) {
    %c0_i32 = arith.constant 0 : i32
    %c0_i32_0 = arith.constant 0 : i32
    %c0_i32_1 = arith.constant 0 : i32
    return %c0_i32, %c0_i32_0 : i32, i32
  }
  func.func @transform_10(%arg0: i32) -> (i32, i32) {
    %c0_i32 = arith.constant 0 : i32
    %c0_i32_0 = arith.constant 0 : i32
    %c0_i32_1 = arith.constant 0 : i32
    return %c0_i32, %c0_i32_0 : i32, i32
  }
  func.func @transform_11(%arg0: i32) -> (i32, i32) {
    %c0_i32 = arith.constant 0 : i32
    %c0_i32_0 = arith.constant 0 : i32
    %c0_i32_1 = arith.constant 0 : i32
    return %c0_i32, %c0_i32_0 : i32, i32
  }
  func.func @transform_12(%arg0: i32) -> (i32, i32) {
    %c0_i32 = arith.constant 0 : i32
    %c0_i32_0 = arith.constant 0 : i32
    %c0_i32_1 = arith.constant 0 : i32
    return %c0_i32, %c0_i32_0 : i32, i32
  }
  func.func @transform_13(%arg0: i32) -> (i32, i32) {
    %c0_i32 = arith.constant 0 : i32
    %c0_i32_0 = arith.constant 0 : i32
    %c0_i32_1 = arith.constant 0 : i32
    return %c0_i32, %c0_i32_0 : i32, i32
  }
  func.func @transform_14(%arg0: i32) -> (i32, i32) {
    %c0_i32 = arith.constant 0 : i32
    %c0_i32_0 = arith.constant 0 : i32
    %c0_i32_1 = arith.constant 0 : i32
    return %c0_i32, %c0_i32_0 : i32, i32
  }
  func.func @transform_15(%arg0: i32) -> (i32, i32) {
    %c0_i32 = arith.constant 0 : i32
    %c0_i32_0 = arith.constant 0 : i32
    %c0_i32_1 = arith.constant 0 : i32
    return %c0_i32, %c0_i32_0 : i32, i32
  }
  func.func @transform_16(%arg0: i32) -> (i32, i32) {
    %c0_i32 = arith.constant 0 : i32
    %c0_i32_0 = arith.constant 0 : i32
    return %arg0, %c0_i32 : i32, i32
  }
  func.func @transform_17(%arg0: i32) -> (i32, i32) {
    %c0_i32 = arith.constant 0 : i32
    %c0_i32_0 = arith.constant 0 : i32
    return %arg0, %c0_i32 : i32, i32
  }
}

module attributes {stable_mosaic.version = 11 : i64} {
  func.func @_fused_kernel(%arg0: i32, %arg1: memref<8x128xf32, #tpu.memory_space<vmem>>, %arg2: memref<8x128xf32, #tpu.memory_space<vmem>>, %arg3: memref<128x128xf32, #tpu.memory_space<vmem>>, %arg4: memref<1x128xf32, #tpu.memory_space<vmem>>, %arg5: memref<128x128xf32, #tpu.memory_space<vmem>>, %arg6: memref<1x128xf32, #tpu.memory_space<vmem>>, %arg7: memref<128x128xf32, #tpu.memory_space<vmem>>, %arg8: memref<1x128xf32, #tpu.memory_space<vmem>>, %arg9: memref<128x128xf32, #tpu.memory_space<vmem>>, %arg10: memref<1x128xf32, #tpu.memory_space<vmem>>, %arg11: memref<128x128xf32, #tpu.memory_space<vmem>>, %arg12: memref<1x128xf32, #tpu.memory_space<vmem>>, %arg13: memref<128x128xf32, #tpu.memory_space<vmem>>, %arg14: memref<1x128xf32, #tpu.memory_space<vmem>>, %arg15: memref<128x128xf32, #tpu.memory_space<vmem>>, %arg16: memref<1x128xf32, #tpu.memory_space<vmem>>, %arg17: memref<8x128xf32, #tpu.memory_space<vmem>>, %arg18: memref<8x128xf32, #tpu.memory_space<vmem>>, %arg19: memref<16x128xf32, #tpu.memory_space<vmem>>) attributes {dimension_semantics = [#tpu.dimension_semantics<parallel>], iteration_bounds = array<i64: 1>, scalar_prefetch = 0 : i64, scratch_operands = 1 : i64, tpu.core_type = #tpu.core_type<tc>, window_params = [{transform_indices = @transform_0, window_bounds = array<i64: 8, 128>}, {transform_indices = @transform_1, window_bounds = array<i64: 8, 128>}, {pipeline_mode = #tpu.pipeline_mode<synchronous>, transform_indices = @transform_2, window_bounds = array<i64: 128, 128>}, {pipeline_mode = #tpu.pipeline_mode<synchronous>, transform_indices = @transform_3, window_bounds = array<i64: 1, 128>}, {pipeline_mode = #tpu.pipeline_mode<synchronous>, transform_indices = @transform_4, window_bounds = array<i64: 128, 128>}, {pipeline_mode = #tpu.pipeline_mode<synchronous>, transform_indices = @transform_5, window_bounds = array<i64: 1, 128>}, {pipeline_mode = #tpu.pipeline_mode<synchronous>, transform_indices = @transform_6, window_bounds = array<i64: 128, 128>}, {pipeline_mode = #tpu.pipeline_mode<synchronous>, transform_indices = @transform_7, window_bounds = array<i64: 1, 128>}, {pipeline_mode = #tpu.pipeline_mode<synchronous>, transform_indices = @transform_8, window_bounds = array<i64: 128, 128>}, {pipeline_mode = #tpu.pipeline_mode<synchronous>, transform_indices = @transform_9, window_bounds = array<i64: 1, 128>}, {pipeline_mode = #tpu.pipeline_mode<synchronous>, transform_indices = @transform_10, window_bounds = array<i64: 128, 128>}, {pipeline_mode = #tpu.pipeline_mode<synchronous>, transform_indices = @transform_11, window_bounds = array<i64: 1, 128>}, {pipeline_mode = #tpu.pipeline_mode<synchronous>, transform_indices = @transform_12, window_bounds = array<i64: 128, 128>}, {pipeline_mode = #tpu.pipeline_mode<synchronous>, transform_indices = @transform_13, window_bounds = array<i64: 1, 128>}, {pipeline_mode = #tpu.pipeline_mode<synchronous>, transform_indices = @transform_14, window_bounds = array<i64: 128, 128>}, {pipeline_mode = #tpu.pipeline_mode<synchronous>, transform_indices = @transform_15, window_bounds = array<i64: 1, 128>}, {transform_indices = @transform_16, window_bounds = array<i64: 8, 128>}, {transform_indices = @transform_17, window_bounds = array<i64: 8, 128>}]} {
    %c0 = arith.constant 0 : index
    %c0_0 = arith.constant 0 : index
    %0 = vector.load %arg1[%c0, %c0_0] : memref<8x128xf32, #tpu.memory_space<vmem>>, vector<8x128xf32>
    %c0_1 = arith.constant 0 : index
    %c0_2 = arith.constant 0 : index
    %1 = vector.load %arg3[%c0_1, %c0_2] : memref<128x128xf32, #tpu.memory_space<vmem>>, vector<128x128xf32>
    %cst = arith.constant dense<0.000000e+00> : vector<8x128xf32>
    %2 = tpu.matmul %0, %1, %cst {dimension_numbers = #tpu.dot_dimension_numbers<[1], [0], [0], [1], [0, 0, 1, 1], [], []>} : vector<8x128xf32>, vector<128x128xf32>, vector<8x128xf32> -> vector<8x128xf32>
    %c0_3 = arith.constant 0 : index
    %c0_4 = arith.constant 0 : index
    %3 = vector.load %arg4[%c0_3, %c0_4] : memref<1x128xf32, #tpu.memory_space<vmem>>, vector<1x128xf32>
    %4 = vector.broadcast %3 : vector<1x128xf32> to vector<8x128xf32>
    %5 = arith.addf %2, %4 : vector<8x128xf32>
    %c0_5 = arith.constant 0 : index
    %c0_6 = arith.constant 0 : index
    %6 = vector.load %arg19[%c0_5, %c0_6] : memref<16x128xf32, #tpu.memory_space<vmem>>, vector<8x128xf32>
    tpu.vector_store %arg19[%c0_5, %c0_6], %5 {strides = array<i32>} : memref<16x128xf32, #tpu.memory_space<vmem>>, vector<8x128xf32>,
    %c0_7 = arith.constant 0 : index
    %c0_8 = arith.constant 0 : index
    %7 = vector.load %arg2[%c0_7, %c0_8] : memref<8x128xf32, #tpu.memory_space<vmem>>, vector<8x128xf32>
    %c0_9 = arith.constant 0 : index
    %c0_10 = arith.constant 0 : index
    %8 = vector.load %arg5[%c0_9, %c0_10] : memref<128x128xf32, #tpu.memory_space<vmem>>, vector<128x128xf32>
    %cst_11 = arith.constant dense<0.000000e+00> : vector<8x128xf32>
    %9 = tpu.matmul %7, %8, %cst_11 {dimension_numbers = #tpu.dot_dimension_numbers<[1], [0], [0], [1], [0, 0, 1, 1], [], []>} : vector<8x128xf32>, vector<128x128xf32>, vector<8x128xf32> -> vector<8x128xf32>
    %c0_12 = arith.constant 0 : index
    %c0_13 = arith.constant 0 : index
    %10 = vector.load %arg6[%c0_12, %c0_13] : memref<1x128xf32, #tpu.memory_space<vmem>>, vector<1x128xf32>
    %11 = vector.broadcast %10 : vector<1x128xf32> to vector<8x128xf32>
    %12 = arith.addf %9, %11 : vector<8x128xf32>
    %cst_14 = arith.constant 0.000000e+00 : f32
    %13 = vector.broadcast %cst_14 : f32 to vector<8x128xf32>
    %14 = arith.maximumf %12, %13 : vector<8x128xf32>
    %c0_15 = arith.constant 0 : index
    %c0_16 = arith.constant 0 : index
    %15 = vector.load %arg7[%c0_15, %c0_16] : memref<128x128xf32, #tpu.memory_space<vmem>>, vector<128x128xf32>
    %cst_17 = arith.constant dense<0.000000e+00> : vector<8x128xf32>
    %16 = tpu.matmul %14, %15, %cst_17 {dimension_numbers = #tpu.dot_dimension_numbers<[1], [0], [0], [1], [0, 0, 1, 1], [], []>} : vector<8x128xf32>, vector<128x128xf32>, vector<8x128xf32> -> vector<8x128xf32>
    %c0_18 = arith.constant 0 : index
    %c0_19 = arith.constant 0 : index
    %17 = vector.load %arg8[%c0_18, %c0_19] : memref<1x128xf32, #tpu.memory_space<vmem>>, vector<1x128xf32>
    %18 = vector.broadcast %17 : vector<1x128xf32> to vector<8x128xf32>
    %19 = arith.addf %16, %18 : vector<8x128xf32>
    %cst_20 = arith.constant 0.000000e+00 : f32
    %20 = vector.broadcast %cst_20 : f32 to vector<8x128xf32>
    %21 = arith.maximumf %19, %20 : vector<8x128xf32>
    %c0_21 = arith.constant 0 : index
    %c0_22 = arith.constant 0 : index
    %22 = vector.load %arg9[%c0_21, %c0_22] : memref<128x128xf32, #tpu.memory_space<vmem>>, vector<128x128xf32>
    %cst_23 = arith.constant dense<0.000000e+00> : vector<8x128xf32>
    %23 = tpu.matmul %21, %22, %cst_23 {dimension_numbers = #tpu.dot_dimension_numbers<[1], [0], [0], [1], [0, 0, 1, 1], [], []>} : vector<8x128xf32>, vector<128x128xf32>, vector<8x128xf32> -> vector<8x128xf32>
    %c0_24 = arith.constant 0 : index
    %c0_25 = arith.constant 0 : index
    %24 = vector.load %arg10[%c0_24, %c0_25] : memref<1x128xf32, #tpu.memory_space<vmem>>, vector<1x128xf32>
    %25 = vector.broadcast %24 : vector<1x128xf32> to vector<8x128xf32>
    %26 = arith.addf %23, %25 : vector<8x128xf32>
    %c8 = arith.constant 8 : index
    %c0_26 = arith.constant 0 : index
    %27 = vector.load %arg19[%c8, %c0_26] : memref<16x128xf32, #tpu.memory_space<vmem>>, vector<8x128xf32>
    tpu.vector_store %arg19[%c8, %c0_26], %26 {strides = array<i32>} : memref<16x128xf32, #tpu.memory_space<vmem>>, vector<8x128xf32>,
    %c0_27 = arith.constant 0 : index
    %c0_28 = arith.constant 0 : index
    %28 = vector.load %arg19[%c0_27, %c0_28] : memref<16x128xf32, #tpu.memory_space<vmem>>, vector<16x128xf32>
    %c0_29 = arith.constant 0 : index
    %c0_30 = arith.constant 0 : index
    %29 = vector.load %arg11[%c0_29, %c0_30] : memref<128x128xf32, #tpu.memory_space<vmem>>, vector<128x128xf32>
    %cst_31 = arith.constant dense<0.000000e+00> : vector<16x128xf32>
    %30 = tpu.matmul %28, %29, %cst_31 {dimension_numbers = #tpu.dot_dimension_numbers<[1], [0], [0], [1], [0, 0, 1, 1], [], []>} : vector<16x128xf32>, vector<128x128xf32>, vector<16x128xf32> -> vector<16x128xf32>
    %c0_32 = arith.constant 0 : index
    %c0_33 = arith.constant 0 : index
    %31 = vector.load %arg12[%c0_32, %c0_33] : memref<1x128xf32, #tpu.memory_space<vmem>>, vector<1x128xf32>
    %32 = vector.broadcast %31 : vector<1x128xf32> to vector<16x128xf32>
    %33 = arith.addf %30, %32 : vector<16x128xf32>
    %cst_34 = arith.constant 0.000000e+00 : f32
    %34 = vector.broadcast %cst_34 : f32 to vector<16x128xf32>
    %35 = arith.maximumf %33, %34 : vector<16x128xf32>
    %c0_35 = arith.constant 0 : index
    %c0_36 = arith.constant 0 : index
    %36 = vector.load %arg13[%c0_35, %c0_36] : memref<128x128xf32, #tpu.memory_space<vmem>>, vector<128x128xf32>
    %cst_37 = arith.constant dense<0.000000e+00> : vector<16x128xf32>
    %37 = tpu.matmul %35, %36, %cst_37 {dimension_numbers = #tpu.dot_dimension_numbers<[1], [0], [0], [1], [0, 0, 1, 1], [], []>} : vector<16x128xf32>, vector<128x128xf32>, vector<16x128xf32> -> vector<16x128xf32>
    %c0_38 = arith.constant 0 : index
    %c0_39 = arith.constant 0 : index
    %38 = vector.load %arg14[%c0_38, %c0_39] : memref<1x128xf32, #tpu.memory_space<vmem>>, vector<1x128xf32>
    %39 = vector.broadcast %38 : vector<1x128xf32> to vector<16x128xf32>
    %40 = arith.addf %37, %39 : vector<16x128xf32>
    %cst_40 = arith.constant 0.000000e+00 : f32
    %41 = vector.broadcast %cst_40 : f32 to vector<16x128xf32>
    %42 = arith.maximumf %40, %41 : vector<16x128xf32>
    %c0_41 = arith.constant 0 : index
    %c0_42 = arith.constant 0 : index
    %43 = vector.load %arg15[%c0_41, %c0_42] : memref<128x128xf32, #tpu.memory_space<vmem>>, vector<128x128xf32>
    %cst_43 = arith.constant dense<0.000000e+00> : vector<16x128xf32>
    %44 = tpu.matmul %42, %43, %cst_43 {dimension_numbers = #tpu.dot_dimension_numbers<[1], [0], [0], [1], [0, 0, 1, 1], [], []>} : vector<16x128xf32>, vector<128x128xf32>, vector<16x128xf32> -> vector<16x128xf32>
    %c0_44 = arith.constant 0 : index
    %c0_45 = arith.constant 0 : index
    %45 = vector.load %arg16[%c0_44, %c0_45] : memref<1x128xf32, #tpu.memory_space<vmem>>, vector<1x128xf32>
    %46 = vector.broadcast %45 : vector<1x128xf32> to vector<16x128xf32>
    %47 = arith.addf %44, %46 : vector<16x128xf32>
    %48 = vector.extract_strided_slice %47 {offsets = [0, 0], sizes = [8, 128], strides = [1, 1]} : vector<16x128xf32> to vector<8x128xf32>
    %c0_46 = arith.constant 0 : index
    %c0_47 = arith.constant 0 : index
    %49 = vector.load %arg17[%c0_46, %c0_47] : memref<8x128xf32, #tpu.memory_space<vmem>>, vector<8x128xf32>
    tpu.vector_store %arg17[%c0_46, %c0_47], %48 {strides = array<i32>} : memref<8x128xf32, #tpu.memory_space<vmem>>, vector<8x128xf32>,
    %50 = vector.extract_strided_slice %47 {offsets = [8, 0], sizes = [8, 128], strides = [1, 1]} : vector<16x128xf32> to vector<8x128xf32>
    %c0_48 = arith.constant 0 : index
    %c0_49 = arith.constant 0 : index
    %51 = vector.load %arg18[%c0_48, %c0_49] : memref<8x128xf32, #tpu.memory_space<vmem>>, vector<8x128xf32>
    tpu.vector_store %arg18[%c0_48, %c0_49], %50 {strides = array<i32>} : memref<8x128xf32, #tpu.memory_space<vmem>>, vector<8x128xf32>,
    return
  }
  func.func @transform_0(%arg0: i32) -> (i32, i32) {
    %c0_i32 = arith.constant 0 : i32
    %c0_i32_0 = arith.constant 0 : i32
    return %arg0, %c0_i32 : i32, i32
  }
  func.func @transform_1(%arg0: i32) -> (i32, i32) {
    %c0_i32 = arith.constant 0 : i32
    %c0_i32_0 = arith.constant 0 : i32
    return %arg0, %c0_i32 : i32, i32
  }
  func.func @transform_2(%arg0: i32) -> (i32, i32) {
    %c0_i32 = arith.constant 0 : i32
    %c0_i32_0 = arith.constant 0 : i32
    %c0_i32_1 = arith.constant 0 : i32
    return %c0_i32, %c0_i32_0 : i32, i32
  }
  func.func @transform_3(%arg0: i32) -> (i32, i32) {
    %c0_i32 = arith.constant 0 : i32
    %c0_i32_0 = arith.constant 0 : i32
    %c0_i32_1 = arith.constant 0 : i32
    return %c0_i32, %c0_i32_0 : i32, i32
  }
  func.func @transform_4(%arg0: i32) -> (i32, i32) {
    %c0_i32 = arith.constant 0 : i32
    %c0_i32_0 = arith.constant 0 : i32
    %c0_i32_1 = arith.constant 0 : i32
    return %c0_i32, %c0_i32_0 : i32, i32
  }
  func.func @transform_5(%arg0: i32) -> (i32, i32) {
    %c0_i32 = arith.constant 0 : i32
    %c0_i32_0 = arith.constant 0 : i32
    %c0_i32_1 = arith.constant 0 : i32
    return %c0_i32, %c0_i32_0 : i32, i32
  }
  func.func @transform_6(%arg0: i32) -> (i32, i32) {
    %c0_i32 = arith.constant 0 : i32
    %c0_i32_0 = arith.constant 0 : i32
    %c0_i32_1 = arith.constant 0 : i32
    return %c0_i32, %c0_i32_0 : i32, i32
  }
  func.func @transform_7(%arg0: i32) -> (i32, i32) {
    %c0_i32 = arith.constant 0 : i32
    %c0_i32_0 = arith.constant 0 : i32
    %c0_i32_1 = arith.constant 0 : i32
    return %c0_i32, %c0_i32_0 : i32, i32
  }
  func.func @transform_8(%arg0: i32) -> (i32, i32) {
    %c0_i32 = arith.constant 0 : i32
    %c0_i32_0 = arith.constant 0 : i32
    %c0_i32_1 = arith.constant 0 : i32
    return %c0_i32, %c0_i32_0 : i32, i32
  }
  func.func @transform_9(%arg0: i32) -> (i32, i32) {
    %c0_i32 = arith.constant 0 : i32
    %c0_i32_0 = arith.constant 0 : i32
    %c0_i32_1 = arith.constant 0 : i32
    return %c0_i32, %c0_i32_0 : i32, i32
  }
  func.func @transform_10(%arg0: i32) -> (i32, i32) {
    %c0_i32 = arith.constant 0 : i32
    %c0_i32_0 = arith.constant 0 : i32
    %c0_i32_1 = arith.constant 0 : i32
    return %c0_i32, %c0_i32_0 : i32, i32
  }
  func.func @transform_11(%arg0: i32) -> (i32, i32) {
    %c0_i32 = arith.constant 0 : i32
    %c0_i32_0 = arith.constant 0 : i32
    %c0_i32_1 = arith.constant 0 : i32
    return %c0_i32, %c0_i32_0 : i32, i32
  }
  func.func @transform_12(%arg0: i32) -> (i32, i32) {
    %c0_i32 = arith.constant 0 : i32
    %c0_i32_0 = arith.constant 0 : i32
    %c0_i32_1 = arith.constant 0 : i32
    return %c0_i32, %c0_i32_0 : i32, i32
  }
  func.func @transform_13(%arg0: i32) -> (i32, i32) {
    %c0_i32 = arith.constant 0 : i32
    %c0_i32_0 = arith.constant 0 : i32
    %c0_i32_1 = arith.constant 0 : i32
    return %c0_i32, %c0_i32_0 : i32, i32
  }
  func.func @transform_14(%arg0: i32) -> (i32, i32) {
    %c0_i32 = arith.constant 0 : i32
    %c0_i32_0 = arith.constant 0 : i32
    %c0_i32_1 = arith.constant 0 : i32
    return %c0_i32, %c0_i32_0 : i32, i32
  }
  func.func @transform_15(%arg0: i32) -> (i32, i32) {
    %c0_i32 = arith.constant 0 : i32
    %c0_i32_0 = arith.constant 0 : i32
    %c0_i32_1 = arith.constant 0 : i32
    return %c0_i32, %c0_i32_0 : i32, i32
  }
  func.func @transform_16(%arg0: i32) -> (i32, i32) {
    %c0_i32 = arith.constant 0 : i32
    %c0_i32_0 = arith.constant 0 : i32
    return %arg0, %c0_i32 : i32, i32
  }
  func.func @transform_17(%arg0: i32) -> (i32, i32) {
    %c0_i32 = arith.constant 0 : i32
    %c0_i32_0 = arith.constant 0 : i32
    return %arg0, %c0_i32 : i32, i32
  }
}

</mosaic_0001>

<llo_original>
// kernel: tpu_custom_call.1
$region0: #{tpu_custom_call.1}
  #allocation0 [shape = 'u32[]', space=smem, size = 0x4, offset = 0x4, fixed_abs, tag = 'smem constant byte address 0x4 - core index']
  #allocation1 [shape = 'u32[144,128]{1,0:T(1,128)}', space=vmem, size = 0x12000, scoped, tag = 'internal scratch']
  #allocation2 [shape = 'f32[16,128]{1,0:T(8,128)}', space=vmem, size = 0x2000, scoped, tag = 'scratch operand']
  %s0 = inlined_call_operand.hbm [shape: f32[8,128], index: 0, kind: input, shape index: {}]
  %s1 = inlined_call_operand.hbm [shape: f32[8,128], index: 1, kind: input, shape index: {}]
  %s2 = inlined_call_operand.hbm [shape: f32[128,128], index: 2, kind: input, shape index: {}]
  %s3 = inlined_call_operand.vmem [shape: f32[1,128], index: 3, kind: input, shape index: {}]
  %s4 = inlined_call_operand.hbm [shape: f32[128,128], index: 4, kind: input, shape index: {}]
  %s5 = inlined_call_operand.vmem [shape: f32[1,128], index: 5, kind: input, shape index: {}]
  %s6 = inlined_call_operand.hbm [shape: f32[128,128], index: 6, kind: input, shape index: {}]
  %s7 = inlined_call_operand.vmem [shape: f32[1,128], index: 7, kind: input, shape index: {}]
  %s8 = inlined_call_operand.hbm [shape: f32[128,128], index: 8, kind: input, shape index: {}]
  %s9 = inlined_call_operand.vmem [shape: f32[1,128], index: 9, kind: input, shape index: {}]
  %s10 = inlined_call_operand.hbm [shape: f32[128,128], index: 10, kind: input, shape index: {}]
  %s11 = inlined_call_operand.vmem [shape: f32[1,128], index: 11, kind: input, shape index: {}]
  %s12 = inlined_call_operand.hbm [shape: f32[128,128], index: 12, kind: input, shape index: {}]
  %s13 = inlined_call_operand.vmem [shape: f32[1,128], index: 13, kind: input, shape index: {}]
  %s14 = inlined_call_operand.hbm [shape: f32[128,128], index: 14, kind: input, shape index: {}]
  %s15 = inlined_call_operand.vmem [shape: f32[1,128], index: 15, kind: input, shape index: {}]
  %s16 = inlined_call_operand.hbm [shape: f32[8,128], index: 16, kind: output, shape index: {0}]
  %s17 = inlined_call_operand.hbm [shape: f32[8,128], index: 17, kind: output, shape index: {1}]
  %18 = xla_tuple %s16, %s17
  %s19 = sld [smem:[#allocation0]]
  $region118: #{tpu_custom_call.1} parent=0
    _
  %s21 = ssub.s32 1, %s19
  %s22 = scalar_select 0, %s21, %s19
  $region1: #{tpu_custom_call.1} parent=0
    #allocation3 [shape = 'u8[4096]{0}', space=vmem, size = 0x1000, scoped, tag = 'input window, operand 0, single buffered']
    #allocation4 [shape = 's32[1]{0}', space=sflag, size = 0x4, scoped, tag = 'scoped memory for tpu_custom_call.1']
    #allocation5 [shape = 's32[1]{0}', space=sflag, size = 0x4, scoped, tag = 'scoped memory for tpu_custom_call.1']
    #allocation6 [shape = 'u8[4096]{0}', space=vmem, size = 0x1000, scoped, tag = 'input window, operand 1, single buffered']
    #allocation7 [shape = 's32[1]{0}', space=sflag, size = 0x4, scoped, tag = 'scoped memory for tpu_custom_call.1']
    #allocation8 [shape = 'u8[65536]{0}', space=vmem, size = 0x10000, scoped, tag = 'input window, operand 2, single buffered']
    #allocation9 [shape = 'u8[65536]{0}', space=vmem, size = 0x10000, scoped, tag = 'input window, operand 4, single buffered']
    #allocation10 [shape = 's32[1]{0}', space=sflag, size = 0x4, scoped, tag = 'scoped memory for tpu_custom_call.1']
    #allocation11 [shape = 'u8[65536]{0}', space=vmem, size = 0x10000, scoped, tag = 'input window, operand 6, single buffered']
    #allocation12 [shape = 'u8[65536]{0}', space=vmem, size = 0x10000, scoped, tag = 'input window, operand 8, single buffered']
    #allocation13 [shape = 's32[1]{0}', space=sflag, size = 0x4, scoped, tag = 'scoped memory for tpu_custom_call.1']
    #allocation14 [shape = 'u8[65536]{0}', space=vmem, size = 0x10000, scoped, tag = 'input window, operand 10, single buffered']
    #allocation15 [shape = 'u8[65536]{0}', space=vmem, size = 0x10000, scoped, tag = 'input window, operand 12, single buffered']
    #allocation16 [shape = 's32[1]{0}', space=sflag, size = 0x4, scoped, tag = 'scoped memory for tpu_custom_call.1']
    #allocation17 [shape = 'u8[65536]{0}', space=vmem, size = 0x10000, scoped, tag = 'input window, operand 14, single buffered']
    #allocation18 [shape = 'u8[4096]{0}', space=vmem, size = 0x1000, scoped, tag = 'output window, operand 0, single buffered']
    #allocation19 [shape = 'u8[4096]{0}', space=vmem, size = 0x1000, scoped, tag = 'output window, operand 1, single buffered']
    #allocation20 [shape = 's32[1]{0}', space=sflag, size = 0x4, scoped, tag = 'scoped memory for tpu_custom_call.1']
    %23 = vsyncpa [#allocation4], 0
    %24 = vsyncpa [#allocation7], 0
    %25 = vsyncpa [#allocation10], 0
    %26 = vsyncpa [#allocation13], 0
    %27 = vsyncpa [#allocation16], 0
    %28 = vsyncpa [#allocation5], 0
    %29 = vsyncpa [#allocation20], 0
    // Predicated region
    $region2: #{tpu_custom_call.1} parent=1 // pred_check
      _
    $region3: #{tpu_custom_call.1} parent=1 // pred_check_branch
      %31 = sbr.rel (0) target = $region5
    $region4: #{tpu_custom_call.1} parent=1 // pred_region
      %s33 = ssub.s32 128, 128
      %34 = vsyncadd [#allocation4], %s33
      %s36 = sshll.u32 [#allocation3], 4
      %s37 = int_to_ptr.vmem [resolvable:$true] %s36
      %39 = dma.hbm_to_vmem [thread:$0]  %s0, 128, %s37, [#allocation4]
    $region5: #{tpu_custom_call.1} parent=1 // pred_fallthru
      _
    // Predicated region
    $region6: #{tpu_custom_call.1} parent=1 // pred_check
      _
    $region7: #{tpu_custom_call.1} parent=1 // pred_check_branch
      %41 = sbr.rel (0) target = $region9
    $region8: #{tpu_custom_call.1} parent=1 // pred_region
      %s43 = ssub.s32 128, 128
      %44 = vsyncadd [#allocation7], %s43
      %s46 = sshll.u32 [#allocation6], 4
      %s47 = int_to_ptr.vmem [resolvable:$true] %s46
      %49 = dma.hbm_to_vmem [thread:$0]  %s1, 128, %s47, [#allocation7]
    $region9: #{tpu_custom_call.1} parent=1 // pred_fallthru
      _
    // Predicated region
    $region10: #{tpu_custom_call.1} parent=1 // pred_check
      _
    $region11: #{tpu_custom_call.1} parent=1 // pred_check_branch
      %51 = sbr.rel (0) target = $region13
    $region12: #{tpu_custom_call.1} parent=1 // pred_region
      %s53 = ssub.s32 2048, 2048
      %54 = vsyncadd [#allocation7], %s53
      %s55 = sshll.u32 [#allocation8], 4
      %s56 = int_to_ptr.vmem [resolvable:$true] %s55
      %61 = dma.hbm_to_vmem [thread:$0]  %s2, 2048, %s56, [#allocation7], 128, 128, 8
    $region13: #{tpu_custom_call.1} parent=1 // pred_fallthru
      _
    // Predicated region
    $region14: #{tpu_custom_call.1} parent=1 // pred_check
      _
    $region15: #{tpu_custom_call.1} parent=1 // pred_check_branch
      %63 = sbr.rel (0) target = $region17
    $region16: #{tpu_custom_call.1} parent=1 // pred_region
      _
    $region17: #{tpu_custom_call.1} parent=1 // pred_fallthru
      _
    // Predicated region
    $region18: #{tpu_custom_call.1} parent=1 // pred_check
      _
    $region19: #{tpu_custom_call.1} parent=1 // pred_check_branch
      %65 = sbr.rel (0) target = $region21
    $region20: #{tpu_custom_call.1} parent=1 // pred_region
      %s67 = ssub.s32 2048, 2048
      %68 = vsyncadd [#allocation10], %s67
      %s69 = sshll.u32 [#allocation9], 4
      %s70 = int_to_ptr.vmem [resolvable:$true] %s69
      %75 = dma.hbm_to_vmem [thread:$0]  %s4, 2048, %s70, [#allocation10], 128, 128, 8
    $region21: #{tpu_custom_call.1} parent=1 // pred_fallthru
      _
    // Predicated region
    $region22: #{tpu_custom_call.1} parent=1 // pred_check
      _
    $region23: #{tpu_custom_call.1} parent=1 // pred_check_branch
      %77 = sbr.rel (0) target = $region25
    $region24: #{tpu_custom_call.1} parent=1 // pred_region
      _
    $region25: #{tpu_custom_call.1} parent=1 // pred_fallthru
      _
    // Predicated region
    $region26: #{tpu_custom_call.1} parent=1 // pred_check
      _
    $region27: #{tpu_custom_call.1} parent=1 // pred_check_branch
      %79 = sbr.rel (0) target = $region29
    $region28: #{tpu_custom_call.1} parent=1 // pred_region
      %s81 = ssub.s32 2048, 2048
      %82 = vsyncadd [#allocation10], %s81
      %s83 = sshll.u32 [#allocation11], 4
      %s84 = int_to_ptr.vmem [resolvable:$true] %s83
      %89 = dma.hbm_to_vmem [thread:$0]  %s6, 2048, %s84, [#allocation10], 128, 128, 8
    $region29: #{tpu_custom_call.1} parent=1 // pred_fallthru
      _
    // Predicated region
    $region30: #{tpu_custom_call.1} parent=1 // pred_check
      _
    $region31: #{tpu_custom_call.1} parent=1 // pred_check_branch
      %91 = sbr.rel (0) target = $region33
    $region32: #{tpu_custom_call.1} parent=1 // pred_region
      _
    $region33: #{tpu_custom_call.1} parent=1 // pred_fallthru
      _
    // Predicated region
    $region34: #{tpu_custom_call.1} parent=1 // pred_check
      _
    $region35: #{tpu_custom_call.1} parent=1 // pred_check_branch
      %93 = sbr.rel (0) target = $region37
    $region36: #{tpu_custom_call.1} parent=1 // pred_region
      %s95 = ssub.s32 2048, 2048
      %96 = vsyncadd [#allocation13], %s95
      %s97 = sshll.u32 [#allocation12], 4
      %s98 = int_to_ptr.vmem [resolvable:$true] %s97
      %103 = dma.hbm_to_vmem [thread:$0]  %s8, 2048, %s98, [#allocation13], 128, 128, 8
    $region37: #{tpu_custom_call.1} parent=1 // pred_fallthru
      _
    // Predicated region
    $region38: #{tpu_custom_call.1} parent=1 // pred_check
      _
    $region39: #{tpu_custom_call.1} parent=1 // pred_check_branch
      %105 = sbr.rel (0) target = $region41
    $region40: #{tpu_custom_call.1} parent=1 // pred_region
      _
    $region41: #{tpu_custom_call.1} parent=1 // pred_fallthru
      _
    // Predicated region
    $region42: #{tpu_custom_call.1} parent=1 // pred_check
      _
    $region43: #{tpu_custom_call.1} parent=1 // pred_check_branch
      %107 = sbr.rel (0) target = $region45
    $region44: #{tpu_custom_call.1} parent=1 // pred_region
      %s109 = ssub.s32 2048, 2048
      %110 = vsyncadd [#allocation13], %s109
      %s111 = sshll.u32 [#allocation14], 4
      %s112 = int_to_ptr.vmem [resolvable:$true] %s111
      %117 = dma.hbm_to_vmem [thread:$0]  %s10, 2048, %s112, [#allocation13], 128, 128, 8
    $region45: #{tpu_custom_call.1} parent=1 // pred_fallthru
      _
    // Predicated region
    $region46: #{tpu_custom_call.1} parent=1 // pred_check
      _
    $region47: #{tpu_custom_call.1} parent=1 // pred_check_branch
      %119 = sbr.rel (0) target = $region49
    $region48: #{tpu_custom_call.1} parent=1 // pred_region
      _
    $region49: #{tpu_custom_call.1} parent=1 // pred_fallthru
      _
    // Predicated region
    $region50: #{tpu_custom_call.1} parent=1 // pred_check
      _
    $region51: #{tpu_custom_call.1} parent=1 // pred_check_branch
      %121 = sbr.rel (0) target = $region53
    $region52: #{tpu_custom_call.1} parent=1 // pred_region
      %s123 = ssub.s32 2048, 2048
      %124 = vsyncadd [#allocation16], %s123
      %s125 = sshll.u32 [#allocation15], 4
      %s126 = int_to_ptr.vmem [resolvable:$true] %s125
      %131 = dma.hbm_to_vmem [thread:$0]  %s12, 2048, %s126, [#allocation16], 128, 128, 8
    $region53: #{tpu_custom_call.1} parent=1 // pred_fallthru
      _
    // Predicated region
    $region54: #{tpu_custom_call.1} parent=1 // pred_check
      _
    $region55: #{tpu_custom_call.1} parent=1 // pred_check_branch
      %133 = sbr.rel (0) target = $region57
    $region56: #{tpu_custom_call.1} parent=1 // pred_region
      _
    $region57: #{tpu_custom_call.1} parent=1 // pred_fallthru
      _
    // Predicated region
    $region58: #{tpu_custom_call.1} parent=1 // pred_check
      _
    $region59: #{tpu_custom_call.1} parent=1 // pred_check_branch
      %135 = sbr.rel (0) target = $region61
    $region60: #{tpu_custom_call.1} parent=1 // pred_region
      %s137 = ssub.s32 2048, 2048
      %138 = vsyncadd [#allocation16], %s137
      %s139 = sshll.u32 [#allocation17], 4
      %s140 = int_to_ptr.vmem [resolvable:$true] %s139
      %145 = dma.hbm_to_vmem [thread:$0]  %s14, 2048, %s140, [#allocation16], 128, 128, 8
    $region61: #{tpu_custom_call.1} parent=1 // pred_fallthru
      _
    // Predicated region
    $region62: #{tpu_custom_call.1} parent=1 // pred_check
      _
    $region63: #{tpu_custom_call.1} parent=1 // pred_check_branch
      %147 = sbr.rel (0) target = $region65
    $region64: #{tpu_custom_call.1} parent=1 // pred_region
      _
    $region65: #{tpu_custom_call.1} parent=1 // pred_fallthru
      _
    // Predicated region
    $region66: #{tpu_custom_call.1} parent=1 // pred_check
      _
    $region67: #{tpu_custom_call.1} parent=1 // pred_check_branch
      %149 = sbr.rel (0) target = $region69
    $region68: #{tpu_custom_call.1} parent=1 // pred_region
      %150 = dma.done [#allocation4], 128
    $region69: #{tpu_custom_call.1} parent=1 // pred_fallthru
      _
    // Predicated region
    $region70: #{tpu_custom_call.1} parent=1 // pred_check
      _
    $region71: #{tpu_custom_call.1} parent=1 // pred_check_branch
      %152 = sbr.rel (0) target = $region73
    $region72: #{tpu_custom_call.1} parent=1 // pred_region
      %153 = dma.done [#allocation7], 128
    $region73: #{tpu_custom_call.1} parent=1 // pred_fallthru
      _
    // Predicated region
    $region74: #{tpu_custom_call.1} parent=1 // pred_check
      _
    $region75: #{tpu_custom_call.1} parent=1 // pred_check_branch
      %155 = sbr.rel (0) target = $region77
    $region76: #{tpu_custom_call.1} parent=1 // pred_region
      %156 = dma.done [#allocation7], 2048
    $region77: #{tpu_custom_call.1} parent=1 // pred_fallthru
      _
    // Predicated region
    $region78: #{tpu_custom_call.1} parent=1 // pred_check
      _
    $region79: #{tpu_custom_call.1} parent=1 // pred_check_branch
      %158 = sbr.rel (0) target = $region81
    $region80: #{tpu_custom_call.1} parent=1 // pred_region
      %159 = dma.done [#allocation10], 2048
    $region81: #{tpu_custom_call.1} parent=1 // pred_fallthru
      _
    // Predicated region
    $region82: #{tpu_custom_call.1} parent=1 // pred_check
      _
    $region83: #{tpu_custom_call.1} parent=1 // pred_check_branch
      %161 = sbr.rel (0) target = $region85
    $region84: #{tpu_custom_call.1} parent=1 // pred_region
      %162 = dma.done [#allocation10], 2048
    $region85: #{tpu_custom_call.1} parent=1 // pred_fallthru
      _
    // Predicated region
    $region86: #{tpu_custom_call.1} parent=1 // pred_check
      _
    $region87: #{tpu_custom_call.1} parent=1 // pred_check_branch
      %164 = sbr.rel (0) target = $region89
    $region88: #{tpu_custom_call.1} parent=1 // pred_region
      %165 = dma.done [#allocation13], 2048
    $region89: #{tpu_custom_call.1} parent=1 // pred_fallthru
      _
    // Predicated region
    $region90: #{tpu_custom_call.1} parent=1 // pred_check
      _
    $region91: #{tpu_custom_call.1} parent=1 // pred_check_branch
      %167 = sbr.rel (0) target = $region93
    $region92: #{tpu_custom_call.1} parent=1 // pred_region
      %168 = dma.done [#allocation13], 2048
    $region93: #{tpu_custom_call.1} parent=1 // pred_fallthru
      _
    // Predicated region
    $region94: #{tpu_custom_call.1} parent=1 // pred_check
      _
    $region95: #{tpu_custom_call.1} parent=1 // pred_check_branch
      %170 = sbr.rel (0) target = $region97
    $region96: #{tpu_custom_call.1} parent=1 // pred_region
      %171 = dma.done [#allocation16], 2048
    $region97: #{tpu_custom_call.1} parent=1 // pred_fallthru
      _
    // Predicated region
    $region98: #{tpu_custom_call.1} parent=1 // pred_check
      _
    $region99: #{tpu_custom_call.1} parent=1 // pred_check_branch
      %173 = sbr.rel (0) target = $region101
    $region100: #{tpu_custom_call.1} parent=1 // pred_region
      %174 = dma.done [#allocation16], 2048
    $region101: #{tpu_custom_call.1} parent=1 // pred_fallthru
      _
    %v175 = vld [vmem:[#allocation3] sm:$0xff]
    %v176 = vld [vmem:[#allocation8] sm:$0xff]
    %v177 = vld [vmem:[#allocation8 + $0x8] sm:$0xff]
    %v178 = vld [vmem:[#allocation8 + $0x10] sm:$0xff]
    %v179 = vld [vmem:[#allocation8 + $0x18] sm:$0xff]
    %v180 = vld [vmem:[#allocation8 + $0x20] sm:$0xff]
    %v181 = vld [vmem:[#allocation8 + $0x28] sm:$0xff]
    %v182 = vld [vmem:[#allocation8 + $0x30] sm:$0xff]
    %v183 = vld [vmem:[#allocation8 + $0x38] sm:$0xff]
    %v184 = vld [vmem:[#allocation8 + $0x40] sm:$0xff]
    %v185 = vld [vmem:[#allocation8 + $0x48] sm:$0xff]
    %v186 = vld [vmem:[#allocation8 + $0x50] sm:$0xff]
    %v187 = vld [vmem:[#allocation8 + $0x58] sm:$0xff]
    %v188 = vld [vmem:[#allocation8 + $0x60] sm:$0xff]
    %v189 = vld [vmem:[#allocation8 + $0x68] sm:$0xff]
    %v190 = vld [vmem:[#allocation8 + $0x70] sm:$0xff]
    %v191 = vld [vmem:[#allocation8 + $0x78] sm:$0xff]
    %v192 = vld [vmem:[%s3] sm:$0x1]
    %v194 = vlaneseq
    %v195 = vshrl.u32 %v194, 7
    %v196 = vsub.s32 0, %v195
    %v197 = vrot.slane %v192, %v196
    %199 = vmatprep.subr.mxu0 0.0
    %200 = vmatpush1.msra.mxu0 %v176
    %201 = vmatprep.subr.mxu0 0.0
    %202 = vmatpush1.msra.mxu0 %v177
    %203 = vmatprep.subr.mxu0 0.0
    %204 = vmatpush1.msra.mxu0 %v178
    %205 = vmatprep.subr.mxu0 0.0
    %206 = vmatpush1.msra.mxu0 %v179
    %207 = vmatprep.subr.mxu0 0.0
    %208 = vmatpush1.msra.mxu0 %v180
    %209 = vmatprep.subr.mxu0 0.0
    %210 = vmatpush1.msra.mxu0 %v181
    %211 = vmatprep.subr.mxu0 0.0
    %212 = vmatpush1.msra.mxu0 %v182
    %213 = vmatprep.subr.mxu0 0.0
    %214 = vmatpush1.msra.mxu0 %v183
    %215 = vmatprep.subr.mxu0 0.0
    %216 = vmatpush1.msra.mxu0 %v184
    %217 = vmatprep.subr.mxu0 0.0
    %218 = vmatpush1.msra.mxu0 %v185
    %219 = vmatprep.subr.mxu0 0.0
    %220 = vmatpush1.msra.mxu0 %v186
    %221 = vmatprep.subr.mxu0 0.0
    %222 = vmatpush1.msra.mxu0 %v187
    %223 = vmatprep.subr.mxu0 0.0
    %224 = vmatpush1.msra.mxu0 %v188
    %225 = vmatprep.subr.mxu0 0.0
    %226 = vmatpush1.msra.mxu0 %v189
    %227 = vmatprep.subr.mxu0 0.0
    %228 = vmatpush1.msra.mxu0 %v190
    %229 = vmatprep.subr.mxu0 0.0
    %230 = vmatpush1.msra.mxu0 %v191
    %231 = vmatprep.subr.mxu0 0.0
    %232 = vmatpush1.msra.mxu0 0.0
    %233 = vmatprep.subr.mxu0 0.0
    %234 = vmatpush1.msra.mxu0 0.0
    %235 = vmatprep.subr.mxu0 0.0
    %236 = vmatpush1.msra.mxu0 0.0
    %237 = vmatprep.subr.mxu0 0.0
    %238 = vmatpush1.msra.mxu0 0.0
    %239 = vmatprep.subr.mxu0 0.0
    %240 = vmatpush1.msra.mxu0 0.0
    %241 = vmatprep.subr.mxu0 0.0
    %242 = vmatpush1.msra.mxu0 0.0
    %243 = vmatprep.subr.mxu0 0.0
    %244 = vmatpush1.msra.mxu0 0.0
    %245 = vmatprep.subr.mxu0 0.0
    %246 = vmatpush1.msra.mxu0 0.0
    %247 = vmatprep.subr.mxu0 0.0
    %248 = vmatpush1.msra.mxu0 0.0
    %249 = vmatprep.subr.mxu0 0.0
    %250 = vmatpush1.msra.mxu0 0.0
    %251 = vmatprep.subr.mxu0 0.0
    %252 = vmatpush1.msra.mxu0 0.0
    %253 = vmatprep.subr.mxu0 0.0
    %254 = vmatpush1.msra.mxu0 0.0
    %255 = vmatprep.subr.mxu0 0.0
    %256 = vmatpush1.msra.mxu0 0.0
    %257 = vmatprep.subr.mxu0 0.0
    %258 = vmatpush1.msra.mxu0 0.0
    %259 = vmatprep.subr.mxu0 0.0
    %260 = vmatpush1.msra.mxu0 0.0
    %261 = vmatprep.subr.mxu0 0.0
    %262 = vmatpush1.msra.mxu0 0.0
    %263 = vmatprep.mubr.f32.mxu0 0.0
    %264 = vmatmul.mubr.f32.gmra.mrb[0].mxu0 %v175
    %v265 = vpop.f32.mrb[0].mxu0
    %v266 = vadd.f32 %v197, %v265
    %v267 = vpop.f32.mrb[0].mxu0
    %268 = vdwg.mxu0
    %269 = vst [vmem:[#allocation2] sm:$0xff] %v266
    %v270 = vld [vmem:[#allocation6] sm:$0xff]
    %v271 = vld [vmem:[#allocation9] sm:$0xff]
    %v272 = vld [vmem:[#allocation9 + $0x8] sm:$0xff]
    %v273 = vld [vmem:[#allocation9 + $0x10] sm:$0xff]
    %v274 = vld [vmem:[#allocation9 + $0x18] sm:$0xff]
    %v275 = vld [vmem:[#allocation9 + $0x20] sm:$0xff]
    %v276 = vld [vmem:[#allocation9 + $0x28] sm:$0xff]
    %v277 = vld [vmem:[#allocation9 + $0x30] sm:$0xff]
    %v278 = vld [vmem:[#allocation9 + $0x38] sm:$0xff]
    %v279 = vld [vmem:[#allocation9 + $0x40] sm:$0xff]
    %v280 = vld [vmem:[#allocation9 + $0x48] sm:$0xff]
    %v281 = vld [vmem:[#allocation9 + $0x50] sm:$0xff]
    %v282 = vld [vmem:[#allocation9 + $0x58] sm:$0xff]
    %v283 = vld [vmem:[#allocation9 + $0x60] sm:$0xff]
    %v284 = vld [vmem:[#allocation9 + $0x68] sm:$0xff]
    %v285 = vld [vmem:[#allocation9 + $0x70] sm:$0xff]
    %v286 = vld [vmem:[#allocation9 + $0x78] sm:$0xff]
    %v287 = vld [vmem:[%s5] sm:$0x1]
    %v289 = vlaneseq
    %v290 = vshrl.u32 %v289, 7
    %v291 = vsub.s32 0, %v290
    %v292 = vrot.slane %v287, %v291
    %294 = vmatprep.subr.mxu0 0.0
    %295 = vmatpush1.msra.mxu0 %v271
    %296 = vmatprep.subr.mxu0 0.0
    %297 = vmatpush1.msra.mxu0 %v272
    %298 = vmatprep.subr.mxu0 0.0
    %299 = vmatpush1.msra.mxu0 %v273
    %300 = vmatprep.subr.mxu0 0.0
    %301 = vmatpush1.msra.mxu0 %v274
    %302 = vmatprep.subr.mxu0 0.0
    %303 = vmatpush1.msra.mxu0 %v275
    %304 = vmatprep.subr.mxu0 0.0
    %305 = vmatpush1.msra.mxu0 %v276
    %306 = vmatprep.subr.mxu0 0.0
    %307 = vmatpush1.msra.mxu0 %v277
    %308 = vmatprep.subr.mxu0 0.0
    %309 = vmatpush1.msra.mxu0 %v278
    %310 = vmatprep.subr.mxu0 0.0
    %311 = vmatpush1.msra.mxu0 %v279
    %312 = vmatprep.subr.mxu0 0.0
    %313 = vmatpush1.msra.mxu0 %v280
    %314 = vmatprep.subr.mxu0 0.0
    %315 = vmatpush1.msra.mxu0 %v281
    %316 = vmatprep.subr.mxu0 0.0
    %317 = vmatpush1.msra.mxu0 %v282
    %318 = vmatprep.subr.mxu0 0.0
    %319 = vmatpush1.msra.mxu0 %v283
    %320 = vmatprep.subr.mxu0 0.0
    %321 = vmatpush1.msra.mxu0 %v284
    %322 = vmatprep.subr.mxu0 0.0
    %323 = vmatpush1.msra.mxu0 %v285
    %324 = vmatprep.subr.mxu0 0.0
    %325 = vmatpush1.msra.mxu0 %v286
    %326 = vmatprep.subr.mxu0 0.0
    %327 = vmatpush1.msra.mxu0 0.0
    %328 = vmatprep.subr.mxu0 0.0
    %329 = vmatpush1.msra.mxu0 0.0
    %330 = vmatprep.subr.mxu0 0.0
    %331 = vmatpush1.msra.mxu0 0.0
    %332 = vmatprep.subr.mxu0 0.0
    %333 = vmatpush1.msra.mxu0 0.0
    %334 = vmatprep.subr.mxu0 0.0
    %335 = vmatpush1.msra.mxu0 0.0
    %336 = vmatprep.subr.mxu0 0.0
    %337 = vmatpush1.msra.mxu0 0.0
    %338 = vmatprep.subr.mxu0 0.0
    %339 = vmatpush1.msra.mxu0 0.0
    %340 = vmatprep.subr.mxu0 0.0
    %341 = vmatpush1.msra.mxu0 0.0
    %342 = vmatprep.subr.mxu0 0.0
    %343 = vmatpush1.msra.mxu0 0.0
    %344 = vmatprep.subr.mxu0 0.0
    %345 = vmatpush1.msra.mxu0 0.0
    %346 = vmatprep.subr.mxu0 0.0
    %347 = vmatpush1.msra.mxu0 0.0
    %348 = vmatprep.subr.mxu0 0.0
    %349 = vmatpush1.msra.mxu0 0.0
    %350 = vmatprep.subr.mxu0 0.0
    %351 = vmatpush1.msra.mxu0 0.0
    %352 = vmatprep.subr.mxu0 0.0
    %353 = vmatpush1.msra.mxu0 0.0
    %354 = vmatprep.subr.mxu0 0.0
    %355 = vmatpush1.msra.mxu0 0.0
    %356 = vmatprep.subr.mxu0 0.0
    %357 = vmatpush1.msra.mxu0 0.0
    %358 = vmatprep.mubr.f32.mxu0 0.0
    %359 = vmatmul.mubr.f32.gmra.mrb[0].mxu0 %v270
    %v360 = vpop.f32.mrb[0].mxu0
    %v361 = vadd.f32 %v292, %v360
    %v362 = vpop.f32.mrb[0].mxu0
    %363 = vdwg.mxu0
    %v364 = vmax.f32 %v361, 0.0
    %v365 = vld [vmem:[#allocation11] sm:$0xff]
    %v366 = vld [vmem:[#allocation11 + $0x8] sm:$0xff]
    %v367 = vld [vmem:[#allocation11 + $0x10] sm:$0xff]
    %v368 = vld [vmem:[#allocation11 + $0x18] sm:$0xff]
    %v369 = vld [vmem:[#allocation11 + $0x20] sm:$0xff]
    %v370 = vld [vmem:[#allocation11 + $0x28] sm:$0xff]
    %v371 = vld [vmem:[#allocation11 + $0x30] sm:$0xff]
    %v372 = vld [vmem:[#allocation11 + $0x38] sm:$0xff]
    %v373 = vld [vmem:[#allocation11 + $0x40] sm:$0xff]
    %v374 = vld [vmem:[#allocation11 + $0x48] sm:$0xff]
    %v375 = vld [vmem:[#allocation11 + $0x50] sm:$0xff]
    %v376 = vld [vmem:[#allocation11 + $0x58] sm:$0xff]
    %v377 = vld [vmem:[#allocation11 + $0x60] sm:$0xff]
    %v378 = vld [vmem:[#allocation11 + $0x68] sm:$0xff]
    %v379 = vld [vmem:[#allocation11 + $0x70] sm:$0xff]
    %v380 = vld [vmem:[#allocation11 + $0x78] sm:$0xff]
    %v381 = vld [vmem:[%s7] sm:$0x1]
    %v383 = vlaneseq
    %v384 = vshrl.u32 %v383, 7
    %v385 = vsub.s32 0, %v384
    %v386 = vrot.slane %v381, %v385
    %388 = vmatprep.subr.mxu0 0.0
    %389 = vmatpush1.msra.mxu0 %v365
    %390 = vmatprep.subr.mxu0 0.0
    %391 = vmatpush1.msra.mxu0 %v366
    %392 = vmatprep.subr.mxu0 0.0
    %393 = vmatpush1.msra.mxu0 %v367
    %394 = vmatprep.subr.mxu0 0.0
    %395 = vmatpush1.msra.mxu0 %v368
    %396 = vmatprep.subr.mxu0 0.0
    %397 = vmatpush1.msra.mxu0 %v369
    %398 = vmatprep.subr.mxu0 0.0
    %399 = vmatpush1.msra.mxu0 %v370
    %400 = vmatprep.subr.mxu0 0.0
    %401 = vmatpush1.msra.mxu0 %v371
    %402 = vmatprep.subr.mxu0 0.0
    %403 = vmatpush1.msra.mxu0 %v372
    %404 = vmatprep.subr.mxu0 0.0
    %405 = vmatpush1.msra.mxu0 %v373
    %406 = vmatprep.subr.mxu0 0.0
    %407 = vmatpush1.msra.mxu0 %v374
    %408 = vmatprep.subr.mxu0 0.0
    %409 = vmatpush1.msra.mxu0 %v375
    %410 = vmatprep.subr.mxu0 0.0
    %411 = vmatpush1.msra.mxu0 %v376
    %412 = vmatprep.subr.mxu0 0.0
    %413 = vmatpush1.msra.mxu0 %v377
    %414 = vmatprep.subr.mxu0 0.0
    %415 = vmatpush1.msra.mxu0 %v378
    %416 = vmatprep.subr.mxu0 0.0
    %417 = vmatpush1.msra.mxu0 %v379
    %418 = vmatprep.subr.mxu0 0.0
    %419 = vmatpush1.msra.mxu0 %v380
    %420 = vmatprep.subr.mxu0 0.0
    %421 = vmatpush1.msra.mxu0 0.0
    %422 = vmatprep.subr.mxu0 0.0
    %423 = vmatpush1.msra.mxu0 0.0
    %424 = vmatprep.subr.mxu0 0.0
    %425 = vmatpush1.msra.mxu0 0.0
    %426 = vmatprep.subr.mxu0 0.0
    %427 = vmatpush1.msra.mxu0 0.0
    %428 = vmatprep.subr.mxu0 0.0
    %429 = vmatpush1.msra.mxu0 0.0
    %430 = vmatprep.subr.mxu0 0.0
    %431 = vmatpush1.msra.mxu0 0.0
    %432 = vmatprep.subr.mxu0 0.0
    %433 = vmatpush1.msra.mxu0 0.0
    %434 = vmatprep.subr.mxu0 0.0
    %435 = vmatpush1.msra.mxu0 0.0
    %436 = vmatprep.subr.mxu0 0.0
    %437 = vmatpush1.msra.mxu0 0.0
    %438 = vmatprep.subr.mxu0 0.0
    %439 = vmatpush1.msra.mxu0 0.0
    %440 = vmatprep.subr.mxu0 0.0
    %441 = vmatpush1.msra.mxu0 0.0
    %442 = vmatprep.subr.mxu0 0.0
    %443 = vmatpush1.msra.mxu0 0.0
    %444 = vmatprep.subr.mxu0 0.0
    %445 = vmatpush1.msra.mxu0 0.0
    %446 = vmatprep.subr.mxu0 0.0
    %447 = vmatpush1.msra.mxu0 0.0
    %448 = vmatprep.subr.mxu0 0.0
    %449 = vmatpush1.msra.mxu0 0.0
    %450 = vmatprep.subr.mxu0 0.0
    %451 = vmatpush1.msra.mxu0 0.0
    %452 = vmatprep.mubr.f32.mxu0 0.0
    %453 = vmatmul.mubr.f32.gmra.mrb[0].mxu0 %v364
    %v454 = vpop.f32.mrb[0].mxu0
    %v455 = vadd.f32 %v386, %v454
    %v456 = vpop.f32.mrb[0].mxu0
    %457 = vdwg.mxu0
    %v458 = vmax.f32 %v455, 0.0
    %v459 = vld [vmem:[#allocation12] sm:$0xff]
    %v460 = vld [vmem:[#allocation12 + $0x8] sm:$0xff]
    %v461 = vld [vmem:[#allocation12 + $0x10] sm:$0xff]
    %v462 = vld [vmem:[#allocation12 + $0x18] sm:$0xff]
    %v463 = vld [vmem:[#allocation12 + $0x20] sm:$0xff]
    %v464 = vld [vmem:[#allocation12 + $0x28] sm:$0xff]
    %v465 = vld [vmem:[#allocation12 + $0x30] sm:$0xff]
    %v466 = vld [vmem:[#allocation12 + $0x38] sm:$0xff]
    %v467 = vld [vmem:[#allocation12 + $0x40] sm:$0xff]
    %v468 = vld [vmem:[#allocation12 + $0x48] sm:$0xff]
    %v469 = vld [vmem:[#allocation12 + $0x50] sm:$0xff]
    %v470 = vld [vmem:[#allocation12 + $0x58] sm:$0xff]
    %v471 = vld [vmem:[#allocation12 + $0x60] sm:$0xff]
    %v472 = vld [vmem:[#allocation12 + $0x68] sm:$0xff]
    %v473 = vld [vmem:[#allocation12 + $0x70] sm:$0xff]
    %v474 = vld [vmem:[#allocation12 + $0x78] sm:$0xff]
    %v475 = vld [vmem:[%s9] sm:$0x1]
    %v477 = vlaneseq
    %v478 = vshrl.u32 %v477, 7
    %v479 = vsub.s32 0, %v478
    %v480 = vrot.slane %v475, %v479
    %482 = vmatprep.subr.mxu0 0.0
    %483 = vmatpush1.msra.mxu0 %v459
    %484 = vmatprep.subr.mxu0 0.0
    %485 = vmatpush1.msra.mxu0 %v460
    %486 = vmatprep.subr.mxu0 0.0
    %487 = vmatpush1.msra.mxu0 %v461
    %488 = vmatprep.subr.mxu0 0.0
    %489 = vmatpush1.msra.mxu0 %v462
    %490 = vmatprep.subr.mxu0 0.0
    %491 = vmatpush1.msra.mxu0 %v463
    %492 = vmatprep.subr.mxu0 0.0
    %493 = vmatpush1.msra.mxu0 %v464
    %494 = vmatprep.subr.mxu0 0.0
    %495 = vmatpush1.msra.mxu0 %v465
    %496 = vmatprep.subr.mxu0 0.0
    %497 = vmatpush1.msra.mxu0 %v466
    %498 = vmatprep.subr.mxu0 0.0
    %499 = vmatpush1.msra.mxu0 %v467
    %500 = vmatprep.subr.mxu0 0.0
    %501 = vmatpush1.msra.mxu0 %v468
    %502 = vmatprep.subr.mxu0 0.0
    %503 = vmatpush1.msra.mxu0 %v469
    %504 = vmatprep.subr.mxu0 0.0
    %505 = vmatpush1.msra.mxu0 %v470
    %506 = vmatprep.subr.mxu0 0.0
    %507 = vmatpush1.msra.mxu0 %v471
    %508 = vmatprep.subr.mxu0 0.0
    %509 = vmatpush1.msra.mxu0 %v472
    %510 = vmatprep.subr.mxu0 0.0
    %511 = vmatpush1.msra.mxu0 %v473
    %512 = vmatprep.subr.mxu0 0.0
    %513 = vmatpush1.msra.mxu0 %v474
    %514 = vmatprep.subr.mxu0 0.0
    %515 = vmatpush1.msra.mxu0 0.0
    %516 = vmatprep.subr.mxu0 0.0
    %517 = vmatpush1.msra.mxu0 0.0
    %518 = vmatprep.subr.mxu0 0.0
    %519 = vmatpush1.msra.mxu0 0.0
    %520 = vmatprep.subr.mxu0 0.0
    %521 = vmatpush1.msra.mxu0 0.0
    %522 = vmatprep.subr.mxu0 0.0
    %523 = vmatpush1.msra.mxu0 0.0
    %524 = vmatprep.subr.mxu0 0.0
    %525 = vmatpush1.msra.mxu0 0.0
    %526 = vmatprep.subr.mxu0 0.0
    %527 = vmatpush1.msra.mxu0 0.0
    %528 = vmatprep.subr.mxu0 0.0
    %529 = vmatpush1.msra.mxu0 0.0
    %530 = vmatprep.subr.mxu0 0.0
    %531 = vmatpush1.msra.mxu0 0.0
    %532 = vmatprep.subr.mxu0 0.0
    %533 = vmatpush1.msra.mxu0 0.0
    %534 = vmatprep.subr.mxu0 0.0
    %535 = vmatpush1.msra.mxu0 0.0
    %536 = vmatprep.subr.mxu0 0.0
    %537 = vmatpush1.msra.mxu0 0.0
    %538 = vmatprep.subr.mxu0 0.0
    %539 = vmatpush1.msra.mxu0 0.0
    %540 = vmatprep.subr.mxu0 0.0
    %541 = vmatpush1.msra.mxu0 0.0
    %542 = vmatprep.subr.mxu0 0.0
    %543 = vmatpush1.msra.mxu0 0.0
    %544 = vmatprep.subr.mxu0 0.0
    %545 = vmatpush1.msra.mxu0 0.0
    %546 = vmatprep.mubr.f32.mxu0 0.0
    %547 = vmatmul.mubr.f32.gmra.mrb[0].mxu0 %v458
    %v548 = vpop.f32.mrb[0].mxu0
    %v549 = vadd.f32 %v480, %v548
    %v550 = vpop.f32.mrb[0].mxu0
    %551 = vdwg.mxu0
    %552 = vst [vmem:[#allocation2 + $0x8] sm:$0xff] %v549
    %v553 = vld [vmem:[#allocation2] sm:$0xff]
    %v554 = vld [vmem:[#allocation2 + $0x8] sm:$0xff]
    %v555 = vld [vmem:[#allocation14] sm:$0xff]
    %v556 = vld [vmem:[#allocation14 + $0x8] sm:$0xff]
    %v557 = vld [vmem:[#allocation14 + $0x10] sm:$0xff]
    %v558 = vld [vmem:[#allocation14 + $0x18] sm:$0xff]
    %v559 = vld [vmem:[#allocation14 + $0x20] sm:$0xff]
    %v560 = vld [vmem:[#allocation14 + $0x28] sm:$0xff]
    %v561 = vld [vmem:[#allocation14 + $0x30] sm:$0xff]
    %v562 = vld [vmem:[#allocation14 + $0x38] sm:$0xff]
    %v563 = vld [vmem:[#allocation14 + $0x40] sm:$0xff]
    %v564 = vld [vmem:[#allocation14 + $0x48] sm:$0xff]
    %v565 = vld [vmem:[#allocation14 + $0x50] sm:$0xff]
    %v566 = vld [vmem:[#allocation14 + $0x58] sm:$0xff]
    %v567 = vld [vmem:[#allocation14 + $0x60] sm:$0xff]
    %v568 = vld [vmem:[#allocation14 + $0x68] sm:$0xff]
    %v569 = vld [vmem:[#allocation14 + $0x70] sm:$0xff]
    %v570 = vld [vmem:[#allocation14 + $0x78] sm:$0xff]
    %v571 = vld [vmem:[%s11] sm:$0x1]
    %v573 = vlaneseq
    %v574 = vshrl.u32 %v573, 7
    %v575 = vsub.s32 0, %v574
    %v576 = vrot.slane %v571, %v575
    %578 = vmatprep.subr.mxu0 0.0
    %579 = vmatpush1.msra.mxu0 %v555
    %580 = vmatprep.subr.mxu0 0.0
    %581 = vmatpush1.msra.mxu0 %v556
    %582 = vmatprep.subr.mxu0 0.0
    %583 = vmatpush1.msra.mxu0 %v557
    %584 = vmatprep.subr.mxu0 0.0
    %585 = vmatpush1.msra.mxu0 %v558
    %586 = vmatprep.subr.mxu0 0.0
    %587 = vmatpush1.msra.mxu0 %v559
    %588 = vmatprep.subr.mxu0 0.0
    %589 = vmatpush1.msra.mxu0 %v560
    %590 = vmatprep.subr.mxu0 0.0
    %591 = vmatpush1.msra.mxu0 %v561
    %592 = vmatprep.subr.mxu0 0.0
    %593 = vmatpush1.msra.mxu0 %v562
    %594 = vmatprep.subr.mxu0 0.0
    %595 = vmatpush1.msra.mxu0 %v563
    %596 = vmatprep.subr.mxu0 0.0
    %597 = vmatpush1.msra.mxu0 %v564
    %598 = vmatprep.subr.mxu0 0.0
    %599 = vmatpush1.msra.mxu0 %v565
    %600 = vmatprep.subr.mxu0 0.0
    %601 = vmatpush1.msra.mxu0 %v566
    %602 = vmatprep.subr.mxu0 0.0
    %603 = vmatpush1.msra.mxu0 %v567
    %604 = vmatprep.subr.mxu0 0.0
    %605 = vmatpush1.msra.mxu0 %v568
    %606 = vmatprep.subr.mxu0 0.0
    %607 = vmatpush1.msra.mxu0 %v569
    %608 = vmatprep.subr.mxu0 0.0
    %609 = vmatpush1.msra.mxu0 %v570
    %610 = vmatprep.subr.mxu0 0.0
    %611 = vmatpush1.msra.mxu0 0.0
    %612 = vmatprep.subr.mxu0 0.0
    %613 = vmatpush1.msra.mxu0 0.0
    %614 = vmatprep.subr.mxu0 0.0
    %615 = vmatpush1.msra.mxu0 0.0
    %616 = vmatprep.subr.mxu0 0.0
    %617 = vmatpush1.msra.mxu0 0.0
    %618 = vmatprep.subr.mxu0 0.0
    %619 = vmatpush1.msra.mxu0 0.0
    %620 = vmatprep.subr.mxu0 0.0
    %621 = vmatpush1.msra.mxu0 0.0
    %622 = vmatprep.subr.mxu0 0.0
    %623 = vmatpush1.msra.mxu0 0.0
    %624 = vmatprep.subr.mxu0 0.0
    %625 = vmatpush1.msra.mxu0 0.0
    %626 = vmatprep.subr.mxu0 0.0
    %627 = vmatpush1.msra.mxu0 0.0
    %628 = vmatprep.subr.mxu0 0.0
    %629 = vmatpush1.msra.mxu0 0.0
    %630 = vmatprep.subr.mxu0 0.0
    %631 = vmatpush1.msra.mxu0 0.0
    %632 = vmatprep.subr.mxu0 0.0
    %633 = vmatpush1.msra.mxu0 0.0
    %634 = vmatprep.subr.mxu0 0.0
    %635 = vmatpush1.msra.mxu0 0.0
    %636 = vmatprep.subr.mxu0 0.0
    %637 = vmatpush1.msra.mxu0 0.0
    %638 = vmatprep.subr.mxu0 0.0
    %639 = vmatpush1.msra.mxu0 0.0
    %640 = vmatprep.subr.mxu0 0.0
    %641 = vmatpush1.msra.mxu0 0.0
    %642 = vmatprep.mubr.f32.mxu0 0.0
    %643 = vmatmul.mubr.f32.gmra.mrb[0].mxu0 %v553
    %v644 = vpop.f32.mrb[0].mxu0
    %v645 = vadd.f32 %v576, %v644
    %v646 = vpop.f32.mrb[0].mxu0
    %647 = vmatprep.mubr.f32.mxu0 0.0
    %648 = vmatmul.mubr.f32.gmra.mrb[0].mxu0 %v554
    %v649 = vpop.f32.mrb[0].mxu0
    %v650 = vadd.f32 %v576, %v649
    %v651 = vpop.f32.mrb[0].mxu0
    %652 = vdwg.mxu0
    %v653 = vmax.f32 %v645, 0.0
    %v654 = vmax.f32 %v650, 0.0
    %v655 = vld [vmem:[#allocation15] sm:$0xff]
    %v656 = vld [vmem:[#allocation15 + $0x8] sm:$0xff]
    %v657 = vld [vmem:[#allocation15 + $0x10] sm:$0xff]
    %v658 = vld [vmem:[#allocation15 + $0x18] sm:$0xff]
    %v659 = vld [vmem:[#allocation15 + $0x20] sm:$0xff]
    %v660 = vld [vmem:[#allocation15 + $0x28] sm:$0xff]
    %v661 = vld [vmem:[#allocation15 + $0x30] sm:$0xff]
    %v662 = vld [vmem:[#allocation15 + $0x38] sm:$0xff]
    %v663 = vld [vmem:[#allocation15 + $0x40] sm:$0xff]
    %v664 = vld [vmem:[#allocation15 + $0x48] sm:$0xff]
    %v665 = vld [vmem:[#allocation15 + $0x50] sm:$0xff]
    %v666 = vld [vmem:[#allocation15 + $0x58] sm:$0xff]
    %v667 = vld [vmem:[#allocation15 + $0x60] sm:$0xff]
    %v668 = vld [vmem:[#allocation15 + $0x68] sm:$0xff]
    %v669 = vld [vmem:[#allocation15 + $0x70] sm:$0xff]
    %v670 = vld [vmem:[#allocation15 + $0x78] sm:$0xff]
    %v671 = vld [vmem:[%s13] sm:$0x1]
    %v673 = vlaneseq
    %v674 = vshrl.u32 %v673, 7
    %v675 = vsub.s32 0, %v674
    %v676 = vrot.slane %v671, %v675
    %678 = vmatprep.subr.mxu0 0.0
    %679 = vmatpush1.msra.mxu0 %v655
    %680 = vmatprep.subr.mxu0 0.0
    %681 = vmatpush1.msra.mxu0 %v656
    %682 = vmatprep.subr.mxu0 0.0
    %683 = vmatpush1.msra.mxu0 %v657
    %684 = vmatprep.subr.mxu0 0.0
    %685 = vmatpush1.msra.mxu0 %v658
    %686 = vmatprep.subr.mxu0 0.0
    %687 = vmatpush1.msra.mxu0 %v659
    %688 = vmatprep.subr.mxu0 0.0
    %689 = vmatpush1.msra.mxu0 %v660
    %690 = vmatprep.subr.mxu0 0.0
    %691 = vmatpush1.msra.mxu0 %v661
    %692 = vmatprep.subr.mxu0 0.0
    %693 = vmatpush1.msra.mxu0 %v662
    %694 = vmatprep.subr.mxu0 0.0
    %695 = vmatpush1.msra.mxu0 %v663
    %696 = vmatprep.subr.mxu0 0.0
    %697 = vmatpush1.msra.mxu0 %v664
    %698 = vmatprep.subr.mxu0 0.0
    %699 = vmatpush1.msra.mxu0 %v665
    %700 = vmatprep.subr.mxu0 0.0
    %701 = vmatpush1.msra.mxu0 %v666
    %702 = vmatprep.subr.mxu0 0.0
    %703 = vmatpush1.msra.mxu0 %v667
    %704 = vmatprep.subr.mxu0 0.0
    %705 = vmatpush1.msra.mxu0 %v668
    %706 = vmatprep.subr.mxu0 0.0
    %707 = vmatpush1.msra.mxu0 %v669
    %708 = vmatprep.subr.mxu0 0.0
    %709 = vmatpush1.msra.mxu0 %v670
    %710 = vmatprep.subr.mxu0 0.0
    %711 = vmatpush1.msra.mxu0 0.0
    %712 = vmatprep.subr.mxu0 0.0
    %713 = vmatpush1.msra.mxu0 0.0
    %714 = vmatprep.subr.mxu0 0.0
    %715 = vmatpush1.msra.mxu0 0.0
    %716 = vmatprep.subr.mxu0 0.0
    %717 = vmatpush1.msra.mxu0 0.0
    %718 = vmatprep.subr.mxu0 0.0
    %719 = vmatpush1.msra.mxu0 0.0
    %720 = vmatprep.subr.mxu0 0.0
    %721 = vmatpush1.msra.mxu0 0.0
    %722 = vmatprep.subr.mxu0 0.0
    %723 = vmatpush1.msra.mxu0 0.0
    %724 = vmatprep.subr.mxu0 0.0
    %725 = vmatpush1.msra.mxu0 0.0
    %726 = vmatprep.subr.mxu0 0.0
    %727 = vmatpush1.msra.mxu0 0.0
    %728 = vmatprep.subr.mxu0 0.0
    %729 = vmatpush1.msra.mxu0 0.0
    %730 = vmatprep.subr.mxu0 0.0
    %731 = vmatpush1.msra.mxu0 0.0
    %732 = vmatprep.subr.mxu0 0.0
    %733 = vmatpush1.msra.mxu0 0.0
    %734 = vmatprep.subr.mxu0 0.0
    %735 = vmatpush1.msra.mxu0 0.0
    %736 = vmatprep.subr.mxu0 0.0
    %737 = vmatpush1.msra.mxu0 0.0
    %738 = vmatprep.subr.mxu0 0.0
    %739 = vmatpush1.msra.mxu0 0.0
    %740 = vmatprep.subr.mxu0 0.0
    %741 = vmatpush1.msra.mxu0 0.0
    %742 = vmatprep.mubr.f32.mxu0 0.0
    %743 = vmatmul.mubr.f32.gmra.mrb[0].mxu0 %v653
    %v744 = vpop.f32.mrb[0].mxu0
    %v745 = vadd.f32 %v676, %v744
    %v746 = vpop.f32.mrb[0].mxu0
    %747 = vmatprep.mubr.f32.mxu0 0.0
    %748 = vmatmul.mubr.f32.gmra.mrb[0].mxu0 %v654
    %v749 = vpop.f32.mrb[0].mxu0
    %v750 = vadd.f32 %v676, %v749
    %v751 = vpop.f32.mrb[0].mxu0
    %752 = vdwg.mxu0
    %v753 = vmax.f32 %v745, 0.0
    %v754 = vmax.f32 %v750, 0.0
    %v755 = vld [vmem:[#allocation17] sm:$0xff]
    %v756 = vld [vmem:[#allocation17 + $0x8] sm:$0xff]
    %v757 = vld [vmem:[#allocation17 + $0x10] sm:$0xff]
    %v758 = vld [vmem:[#allocation17 + $0x18] sm:$0xff]
    %v759 = vld [vmem:[#allocation17 + $0x20] sm:$0xff]
    %v760 = vld [vmem:[#allocation17 + $0x28] sm:$0xff]
    %v761 = vld [vmem:[#allocation17 + $0x30] sm:$0xff]
    %v762 = vld [vmem:[#allocation17 + $0x38] sm:$0xff]
    %v763 = vld [vmem:[#allocation17 + $0x40] sm:$0xff]
    %v764 = vld [vmem:[#allocation17 + $0x48] sm:$0xff]
    %v765 = vld [vmem:[#allocation17 + $0x50] sm:$0xff]
    %v766 = vld [vmem:[#allocation17 + $0x58] sm:$0xff]
    %v767 = vld [vmem:[#allocation17 + $0x60] sm:$0xff]
    %v768 = vld [vmem:[#allocation17 + $0x68] sm:$0xff]
    %v769 = vld [vmem:[#allocation17 + $0x70] sm:$0xff]
    %v770 = vld [vmem:[#allocation17 + $0x78] sm:$0xff]
    %v771 = vld [vmem:[%s15] sm:$0x1]
    %v773 = vlaneseq
    %v774 = vshrl.u32 %v773, 7
    %v775 = vsub.s32 0, %v774
    %v776 = vrot.slane %v771, %v775
    %778 = vmatprep.subr.mxu0 0.0
    %779 = vmatpush1.msra.mxu0 %v755
    %780 = vmatprep.subr.mxu0 0.0
    %781 = vmatpush1.msra.mxu0 %v756
    %782 = vmatprep.subr.mxu0 0.0
    %783 = vmatpush1.msra.mxu0 %v757
    %784 = vmatprep.subr.mxu0 0.0
    %785 = vmatpush1.msra.mxu0 %v758
    %786 = vmatprep.subr.mxu0 0.0
    %787 = vmatpush1.msra.mxu0 %v759
    %788 = vmatprep.subr.mxu0 0.0
    %789 = vmatpush1.msra.mxu0 %v760
    %790 = vmatprep.subr.mxu0 0.0
    %791 = vmatpush1.msra.mxu0 %v761
    %792 = vmatprep.subr.mxu0 0.0
    %793 = vmatpush1.msra.mxu0 %v762
    %794 = vmatprep.subr.mxu0 0.0
    %795 = vmatpush1.msra.mxu0 %v763
    %796 = vmatprep.subr.mxu0 0.0
    %797 = vmatpush1.msra.mxu0 %v764
    %798 = vmatprep.subr.mxu0 0.0
    %799 = vmatpush1.msra.mxu0 %v765
    %800 = vmatprep.subr.mxu0 0.0
    %801 = vmatpush1.msra.mxu0 %v766
    %802 = vmatprep.subr.mxu0 0.0
    %803 = vmatpush1.msra.mxu0 %v767
    %804 = vmatprep.subr.mxu0 0.0
    %805 = vmatpush1.msra.mxu0 %v768
    %806 = vmatprep.subr.mxu0 0.0
    %807 = vmatpush1.msra.mxu0 %v769
    %808 = vmatprep.subr.mxu0 0.0
    %809 = vmatpush1.msra.mxu0 %v770
    %810 = vmatprep.subr.mxu0 0.0
    %811 = vmatpush1.msra.mxu0 0.0
    %812 = vmatprep.subr.mxu0 0.0
    %813 = vmatpush1.msra.mxu0 0.0
    %814 = vmatprep.subr.mxu0 0.0
    %815 = vmatpush1.msra.mxu0 0.0
    %816 = vmatprep.subr.mxu0 0.0
    %817 = vmatpush1.msra.mxu0 0.0
    %818 = vmatprep.subr.mxu0 0.0
    %819 = vmatpush1.msra.mxu0 0.0
    %820 = vmatprep.subr.mxu0 0.0
    %821 = vmatpush1.msra.mxu0 0.0
    %822 = vmatprep.subr.mxu0 0.0
    %823 = vmatpush1.msra.mxu0 0.0
    %824 = vmatprep.subr.mxu0 0.0
    %825 = vmatpush1.msra.mxu0 0.0
    %826 = vmatprep.subr.mxu0 0.0
    %827 = vmatpush1.msra.mxu0 0.0
    %828 = vmatprep.subr.mxu0 0.0
    %829 = vmatpush1.msra.mxu0 0.0
    %830 = vmatprep.subr.mxu0 0.0
    %831 = vmatpush1.msra.mxu0 0.0
    %832 = vmatprep.subr.mxu0 0.0
    %833 = vmatpush1.msra.mxu0 0.0
    %834 = vmatprep.subr.mxu0 0.0
    %835 = vmatpush1.msra.mxu0 0.0
    %836 = vmatprep.subr.mxu0 0.0
    %837 = vmatpush1.msra.mxu0 0.0
    %838 = vmatprep.subr.mxu0 0.0
    %839 = vmatpush1.msra.mxu0 0.0
    %840 = vmatprep.subr.mxu0 0.0
    %841 = vmatpush1.msra.mxu0 0.0
    %842 = vmatprep.mubr.f32.mxu0 0.0
    %843 = vmatmul.mubr.f32.gmra.mrb[0].mxu0 %v753
    %v844 = vpop.f32.mrb[0].mxu0
    %v845 = vadd.f32 %v776, %v844
    %v846 = vpop.f32.mrb[0].mxu0
    %847 = vmatprep.mubr.f32.mxu0 0.0
    %848 = vmatmul.mubr.f32.gmra.mrb[0].mxu0 %v754
    %v849 = vpop.f32.mrb[0].mxu0
    %v850 = vadd.f32 %v776, %v849
    %v851 = vpop.f32.mrb[0].mxu0
    %852 = vdwg.mxu0
    %853 = vst [vmem:[#allocation18] sm:$0xff] %v845
    %854 = vst [vmem:[#allocation19] sm:$0xff] %v850
    // Predicated region
    $region102: #{tpu_custom_call.1} parent=1 // pred_check
      _
    $region103: #{tpu_custom_call.1} parent=1 // pred_check_branch
      %856 = sbr.rel (0) target = $region105
    $region104: #{tpu_custom_call.1} parent=1 // pred_region
      %s858 = ssub.s32 128, 128
      %859 = vsyncadd [#allocation5], %s858
      %s861 = sshll.u32 [#allocation18], 4
      %s862 = int_to_ptr.vmem [resolvable:$true] %s861
      %864 = dma.vmem_to_hbm [thread:$0]  %s862, 128, %s16, [#allocation5]
    $region105: #{tpu_custom_call.1} parent=1 // pred_fallthru
      _
    // Predicated region
    $region106: #{tpu_custom_call.1} parent=1 // pred_check
      _
    $region107: #{tpu_custom_call.1} parent=1 // pred_check_branch
      %866 = sbr.rel (0) target = $region109
    $region108: #{tpu_custom_call.1} parent=1 // pred_region
      %s868 = ssub.s32 128, 128
      %869 = vsyncadd [#allocation20], %s868
      %s871 = sshll.u32 [#allocation19], 4
      %s872 = int_to_ptr.vmem [resolvable:$true] %s871
      %874 = dma.vmem_to_hbm [thread:$0]  %s872, 128, %s17, [#allocation20]
    $region109: #{tpu_custom_call.1} parent=1 // pred_fallthru
      _
    // Predicated region
    $region110: #{tpu_custom_call.1} parent=1 // pred_check
      _
    $region111: #{tpu_custom_call.1} parent=1 // pred_check_branch
      %876 = sbr.rel (0) target = $region113
    $region112: #{tpu_custom_call.1} parent=1 // pred_region
      %877 = dma.done [#allocation5], 128
    $region113: #{tpu_custom_call.1} parent=1 // pred_fallthru
      _
    // Predicated region
    $region114: #{tpu_custom_call.1} parent=1 // pred_check
      _
    $region115: #{tpu_custom_call.1} parent=1 // pred_check_branch
      %879 = sbr.rel (0) target = $region117
    $region116: #{tpu_custom_call.1} parent=1 // pred_region
      %880 = dma.done [#allocation20], 128
    $region117: #{tpu_custom_call.1} parent=1 // pred_fallthru
      _
    %881 = vsyncpa [#allocation4], 1
    %882 = vsyncpa [#allocation7], 1
    %883 = vsyncpa [#allocation10], 1
    %884 = vsyncpa [#allocation13], 1
    %885 = vsyncpa [#allocation16], 1
    %886 = vsyncpa [#allocation5], 1
    %887 = vsyncpa [#allocation20], 1

// kernel: tpu_custom_call.1
$region0: #{tpu_custom_call.1}
  #allocation0 [shape = 'u32[]', space=smem, size = 0x4, offset = 0x4, fixed_abs, tag = 'smem constant byte address 0x4 - core index']
  #allocation1 [shape = 'u32[144,128]{1,0:T(1,128)}', space=vmem, size = 0x12000, scoped, tag = 'internal scratch']
  #allocation2 [shape = 'f32[16,128]{1,0:T(8,128)}', space=vmem, size = 0x2000, scoped, tag = 'scratch operand']
  %s0 = inlined_call_operand.hbm [shape: f32[8,128], index: 0, kind: input, shape index: {}]
  %s1 = inlined_call_operand.hbm [shape: f32[8,128], index: 1, kind: input, shape index: {}]
  %s2 = inlined_call_operand.hbm [shape: f32[128,128], index: 2, kind: input, shape index: {}]
  %s3 = inlined_call_operand.vmem [shape: f32[1,128], index: 3, kind: input, shape index: {}]
  %s4 = inlined_call_operand.hbm [shape: f32[128,128], index: 4, kind: input, shape index: {}]
  %s5 = inlined_call_operand.vmem [shape: f32[1,128], index: 5, kind: input, shape index: {}]
  %s6 = inlined_call_operand.hbm [shape: f32[128,128], index: 6, kind: input, shape index: {}]
  %s7 = inlined_call_operand.vmem [shape: f32[1,128], index: 7, kind: input, shape index: {}]
  %s8 = inlined_call_operand.hbm [shape: f32[128,128], index: 8, kind: input, shape index: {}]
  %s9 = inlined_call_operand.vmem [shape: f32[1,128], index: 9, kind: input, shape index: {}]
  %s10 = inlined_call_operand.hbm [shape: f32[128,128], index: 10, kind: input, shape index: {}]
  %s11 = inlined_call_operand.vmem [shape: f32[1,128], index: 11, kind: input, shape index: {}]
  %s12 = inlined_call_operand.hbm [shape: f32[128,128], index: 12, kind: input, shape index: {}]
  %s13 = inlined_call_operand.vmem [shape: f32[1,128], index: 13, kind: input, shape index: {}]
  %s14 = inlined_call_operand.hbm [shape: f32[128,128], index: 14, kind: input, shape index: {}]
  %s15 = inlined_call_operand.vmem [shape: f32[1,128], index: 15, kind: input, shape index: {}]
  %s16 = inlined_call_operand.hbm [shape: f32[8,128], index: 16, kind: output, shape index: {0}]
  %s17 = inlined_call_operand.hbm [shape: f32[8,128], index: 17, kind: output, shape index: {1}]
  %18 = xla_tuple %s16, %s17
  %s19 = sld [smem:[#allocation0]]
  $region118: #{tpu_custom_call.1} parent=0
    _
  %s21 = ssub.s32 1, %s19
  %s22 = scalar_select 0, %s21, %s19
  $region1: #{tpu_custom_call.1} parent=0
    #allocation3 [shape = 'u8[4096]{0}', space=vmem, size = 0x1000, scoped, tag = 'input window, operand 0, single buffered']
    #allocation4 [shape = 's32[1]{0}', space=sflag, size = 0x4, scoped, tag = 'scoped memory for tpu_custom_call.1']
    #allocation5 [shape = 's32[1]{0}', space=sflag, size = 0x4, scoped, tag = 'scoped memory for tpu_custom_call.1']
    #allocation6 [shape = 'u8[4096]{0}', space=vmem, size = 0x1000, scoped, tag = 'input window, operand 1, single buffered']
    #allocation7 [shape = 's32[1]{0}', space=sflag, size = 0x4, scoped, tag = 'scoped memory for tpu_custom_call.1']
    #allocation8 [shape = 'u8[65536]{0}', space=vmem, size = 0x10000, scoped, tag = 'input window, operand 2, single buffered']
    #allocation9 [shape = 'u8[65536]{0}', space=vmem, size = 0x10000, scoped, tag = 'input window, operand 4, single buffered']
    #allocation10 [shape = 's32[1]{0}', space=sflag, size = 0x4, scoped, tag = 'scoped memory for tpu_custom_call.1']
    #allocation11 [shape = 'u8[65536]{0}', space=vmem, size = 0x10000, scoped, tag = 'input window, operand 6, single buffered']
    #allocation12 [shape = 'u8[65536]{0}', space=vmem, size = 0x10000, scoped, tag = 'input window, operand 8, single buffered']
    #allocation13 [shape = 's32[1]{0}', space=sflag, size = 0x4, scoped, tag = 'scoped memory for tpu_custom_call.1']
    #allocation14 [shape = 'u8[65536]{0}', space=vmem, size = 0x10000, scoped, tag = 'input window, operand 10, single buffered']
    #allocation15 [shape = 'u8[65536]{0}', space=vmem, size = 0x10000, scoped, tag = 'input window, operand 12, single buffered']
    #allocation16 [shape = 's32[1]{0}', space=sflag, size = 0x4, scoped, tag = 'scoped memory for tpu_custom_call.1']
    #allocation17 [shape = 'u8[65536]{0}', space=vmem, size = 0x10000, scoped, tag = 'input window, operand 14, single buffered']
    #allocation18 [shape = 'u8[4096]{0}', space=vmem, size = 0x1000, scoped, tag = 'output window, operand 0, single buffered']
    #allocation19 [shape = 'u8[4096]{0}', space=vmem, size = 0x1000, scoped, tag = 'output window, operand 1, single buffered']
    #allocation20 [shape = 's32[1]{0}', space=sflag, size = 0x4, scoped, tag = 'scoped memory for tpu_custom_call.1']
    %23 = vsyncpa [#allocation4], 0
    %24 = vsyncpa [#allocation7], 0
    %25 = vsyncpa [#allocation10], 0
    %26 = vsyncpa [#allocation13], 0
    %27 = vsyncpa [#allocation16], 0
    %28 = vsyncpa [#allocation5], 0
    %29 = vsyncpa [#allocation20], 0
    // Predicated region
    $region2: #{tpu_custom_call.1} parent=1 // pred_check
      _
    $region3: #{tpu_custom_call.1} parent=1 // pred_check_branch
      %31 = sbr.rel (0) target = $region5
    $region4: #{tpu_custom_call.1} parent=1 // pred_region
      %s33 = ssub.s32 128, 128
      %34 = vsyncadd [#allocation4], %s33
      %s36 = sshll.u32 [#allocation3], 4
      %s37 = int_to_ptr.vmem [resolvable:$true] %s36
      %39 = dma.hbm_to_vmem [thread:$0]  %s0, 128, %s37, [#allocation4]
    $region5: #{tpu_custom_call.1} parent=1 // pred_fallthru
      _
    // Predicated region
    $region6: #{tpu_custom_call.1} parent=1 // pred_check
      _
    $region7: #{tpu_custom_call.1} parent=1 // pred_check_branch
      %41 = sbr.rel (0) target = $region9
    $region8: #{tpu_custom_call.1} parent=1 // pred_region
      %s43 = ssub.s32 128, 128
      %44 = vsyncadd [#allocation7], %s43
      %s46 = sshll.u32 [#allocation6], 4
      %s47 = int_to_ptr.vmem [resolvable:$true] %s46
      %49 = dma.hbm_to_vmem [thread:$0]  %s1, 128, %s47, [#allocation7]
    $region9: #{tpu_custom_call.1} parent=1 // pred_fallthru
      _
    // Predicated region
    $region10: #{tpu_custom_call.1} parent=1 // pred_check
      _
    $region11: #{tpu_custom_call.1} parent=1 // pred_check_branch
      %51 = sbr.rel (0) target = $region13
    $region12: #{tpu_custom_call.1} parent=1 // pred_region
      %s53 = ssub.s32 2048, 2048
      %54 = vsyncadd [#allocation7], %s53
      %s55 = sshll.u32 [#allocation8], 4
      %s56 = int_to_ptr.vmem [resolvable:$true] %s55
      %61 = dma.hbm_to_vmem [thread:$0]  %s2, 2048, %s56, [#allocation7], 128, 128, 8
    $region13: #{tpu_custom_call.1} parent=1 // pred_fallthru
      _
    // Predicated region
    $region14: #{tpu_custom_call.1} parent=1 // pred_check
      _
    $region15: #{tpu_custom_call.1} parent=1 // pred_check_branch
      %63 = sbr.rel (0) target = $region17
    $region16: #{tpu_custom_call.1} parent=1 // pred_region
      _
    $region17: #{tpu_custom_call.1} parent=1 // pred_fallthru
      _
    // Predicated region
    $region18: #{tpu_custom_call.1} parent=1 // pred_check
      _
    $region19: #{tpu_custom_call.1} parent=1 // pred_check_branch
      %65 = sbr.rel (0) target = $region21
    $region20: #{tpu_custom_call.1} parent=1 // pred_region
      %s67 = ssub.s32 2048, 2048
      %68 = vsyncadd [#allocation10], %s67
      %s69 = sshll.u32 [#allocation9], 4
      %s70 = int_to_ptr.vmem [resolvable:$true] %s69
      %75 = dma.hbm_to_vmem [thread:$0]  %s4, 2048, %s70, [#allocation10], 128, 128, 8
    $region21: #{tpu_custom_call.1} parent=1 // pred_fallthru
      _
    // Predicated region
    $region22: #{tpu_custom_call.1} parent=1 // pred_check
      _
    $region23: #{tpu_custom_call.1} parent=1 // pred_check_branch
      %77 = sbr.rel (0) target = $region25
    $region24: #{tpu_custom_call.1} parent=1 // pred_region
      _
    $region25: #{tpu_custom_call.1} parent=1 // pred_fallthru
      _
    // Predicated region
    $region26: #{tpu_custom_call.1} parent=1 // pred_check
      _
    $region27: #{tpu_custom_call.1} parent=1 // pred_check_branch
      %79 = sbr.rel (0) target = $region29
    $region28: #{tpu_custom_call.1} parent=1 // pred_region
      %s81 = ssub.s32 2048, 2048
      %82 = vsyncadd [#allocation10], %s81
      %s83 = sshll.u32 [#allocation11], 4
      %s84 = int_to_ptr.vmem [resolvable:$true] %s83
      %89 = dma.hbm_to_vmem [thread:$0]  %s6, 2048, %s84, [#allocation10], 128, 128, 8
    $region29: #{tpu_custom_call.1} parent=1 // pred_fallthru
      _
    // Predicated region
    $region30: #{tpu_custom_call.1} parent=1 // pred_check
      _
    $region31: #{tpu_custom_call.1} parent=1 // pred_check_branch
      %91 = sbr.rel (0) target = $region33
    $region32: #{tpu_custom_call.1} parent=1 // pred_region
      _
    $region33: #{tpu_custom_call.1} parent=1 // pred_fallthru
      _
    // Predicated region
    $region34: #{tpu_custom_call.1} parent=1 // pred_check
      _
    $region35: #{tpu_custom_call.1} parent=1 // pred_check_branch
      %93 = sbr.rel (0) target = $region37
    $region36: #{tpu_custom_call.1} parent=1 // pred_region
      %s95 = ssub.s32 2048, 2048
      %96 = vsyncadd [#allocation13], %s95
      %s97 = sshll.u32 [#allocation12], 4
      %s98 = int_to_ptr.vmem [resolvable:$true] %s97
      %103 = dma.hbm_to_vmem [thread:$0]  %s8, 2048, %s98, [#allocation13], 128, 128, 8
    $region37: #{tpu_custom_call.1} parent=1 // pred_fallthru
      _
    // Predicated region
    $region38: #{tpu_custom_call.1} parent=1 // pred_check
      _
    $region39: #{tpu_custom_call.1} parent=1 // pred_check_branch
      %105 = sbr.rel (0) target = $region41
    $region40: #{tpu_custom_call.1} parent=1 // pred_region
      _
    $region41: #{tpu_custom_call.1} parent=1 // pred_fallthru
      _
    // Predicated region
    $region42: #{tpu_custom_call.1} parent=1 // pred_check
      _
    $region43: #{tpu_custom_call.1} parent=1 // pred_check_branch
      %107 = sbr.rel (0) target = $region45
    $region44: #{tpu_custom_call.1} parent=1 // pred_region
      %s109 = ssub.s32 2048, 2048
      %110 = vsyncadd [#allocation13], %s109
      %s111 = sshll.u32 [#allocation14], 4
      %s112 = int_to_ptr.vmem [resolvable:$true] %s111
      %117 = dma.hbm_to_vmem [thread:$0]  %s10, 2048, %s112, [#allocation13], 128, 128, 8
    $region45: #{tpu_custom_call.1} parent=1 // pred_fallthru
      _
    // Predicated region
    $region46: #{tpu_custom_call.1} parent=1 // pred_check
      _
    $region47: #{tpu_custom_call.1} parent=1 // pred_check_branch
      %119 = sbr.rel (0) target = $region49
    $region48: #{tpu_custom_call.1} parent=1 // pred_region
      _
    $region49: #{tpu_custom_call.1} parent=1 // pred_fallthru
      _
    // Predicated region
    $region50: #{tpu_custom_call.1} parent=1 // pred_check
      _
    $region51: #{tpu_custom_call.1} parent=1 // pred_check_branch
      %121 = sbr.rel (0) target = $region53
    $region52: #{tpu_custom_call.1} parent=1 // pred_region
      %s123 = ssub.s32 2048, 2048
      %124 = vsyncadd [#allocation16], %s123
      %s125 = sshll.u32 [#allocation15], 4
      %s126 = int_to_ptr.vmem [resolvable:$true] %s125
      %131 = dma.hbm_to_vmem [thread:$0]  %s12, 2048, %s126, [#allocation16], 128, 128, 8
    $region53: #{tpu_custom_call.1} parent=1 // pred_fallthru
      _
    // Predicated region
    $region54: #{tpu_custom_call.1} parent=1 // pred_check
      _
    $region55: #{tpu_custom_call.1} parent=1 // pred_check_branch
      %133 = sbr.rel (0) target = $region57
    $region56: #{tpu_custom_call.1} parent=1 // pred_region
      _
    $region57: #{tpu_custom_call.1} parent=1 // pred_fallthru
      _
    // Predicated region
    $region58: #{tpu_custom_call.1} parent=1 // pred_check
      _
    $region59: #{tpu_custom_call.1} parent=1 // pred_check_branch
      %135 = sbr.rel (0) target = $region61
    $region60: #{tpu_custom_call.1} parent=1 // pred_region
      %s137 = ssub.s32 2048, 2048
      %138 = vsyncadd [#allocation16], %s137
      %s139 = sshll.u32 [#allocation17], 4
      %s140 = int_to_ptr.vmem [resolvable:$true] %s139
      %145 = dma.hbm_to_vmem [thread:$0]  %s14, 2048, %s140, [#allocation16], 128, 128, 8
    $region61: #{tpu_custom_call.1} parent=1 // pred_fallthru
      _
    // Predicated region
    $region62: #{tpu_custom_call.1} parent=1 // pred_check
      _
    $region63: #{tpu_custom_call.1} parent=1 // pred_check_branch
      %147 = sbr.rel (0) target = $region65
    $region64: #{tpu_custom_call.1} parent=1 // pred_region
      _
    $region65: #{tpu_custom_call.1} parent=1 // pred_fallthru
      _
    // Predicated region
    $region66: #{tpu_custom_call.1} parent=1 // pred_check
      _
    $region67: #{tpu_custom_call.1} parent=1 // pred_check_branch
      %149 = sbr.rel (0) target = $region69
    $region68: #{tpu_custom_call.1} parent=1 // pred_region
      %150 = dma.done [#allocation4], 128
    $region69: #{tpu_custom_call.1} parent=1 // pred_fallthru
      _
    // Predicated region
    $region70: #{tpu_custom_call.1} parent=1 // pred_check
      _
    $region71: #{tpu_custom_call.1} parent=1 // pred_check_branch
      %152 = sbr.rel (0) target = $region73
    $region72: #{tpu_custom_call.1} parent=1 // pred_region
      %153 = dma.done [#allocation7], 128
    $region73: #{tpu_custom_call.1} parent=1 // pred_fallthru
      _
    // Predicated region
    $region74: #{tpu_custom_call.1} parent=1 // pred_check
      _
    $region75: #{tpu_custom_call.1} parent=1 // pred_check_branch
      %155 = sbr.rel (0) target = $region77
    $region76: #{tpu_custom_call.1} parent=1 // pred_region
      %156 = dma.done [#allocation7], 2048
    $region77: #{tpu_custom_call.1} parent=1 // pred_fallthru
      _
    // Predicated region
    $region78: #{tpu_custom_call.1} parent=1 // pred_check
      _
    $region79: #{tpu_custom_call.1} parent=1 // pred_check_branch
      %158 = sbr.rel (0) target = $region81
    $region80: #{tpu_custom_call.1} parent=1 // pred_region
      %159 = dma.done [#allocation10], 2048
    $region81: #{tpu_custom_call.1} parent=1 // pred_fallthru
      _
    // Predicated region
    $region82: #{tpu_custom_call.1} parent=1 // pred_check
      _
    $region83: #{tpu_custom_call.1} parent=1 // pred_check_branch
      %161 = sbr.rel (0) target = $region85
    $region84: #{tpu_custom_call.1} parent=1 // pred_region
      %162 = dma.done [#allocation10], 2048
    $region85: #{tpu_custom_call.1} parent=1 // pred_fallthru
      _
    // Predicated region
    $region86: #{tpu_custom_call.1} parent=1 // pred_check
      _
    $region87: #{tpu_custom_call.1} parent=1 // pred_check_branch
      %164 = sbr.rel (0) target = $region89
    $region88: #{tpu_custom_call.1} parent=1 // pred_region
      %165 = dma.done [#allocation13], 2048
    $region89: #{tpu_custom_call.1} parent=1 // pred_fallthru
      _
    // Predicated region
    $region90: #{tpu_custom_call.1} parent=1 // pred_check
      _
    $region91: #{tpu_custom_call.1} parent=1 // pred_check_branch
      %167 = sbr.rel (0) target = $region93
    $region92: #{tpu_custom_call.1} parent=1 // pred_region
      %168 = dma.done [#allocation13], 2048
    $region93: #{tpu_custom_call.1} parent=1 // pred_fallthru
      _
    // Predicated region
    $region94: #{tpu_custom_call.1} parent=1 // pred_check
      _
    $region95: #{tpu_custom_call.1} parent=1 // pred_check_branch
      %170 = sbr.rel (0) target = $region97
    $region96: #{tpu_custom_call.1} parent=1 // pred_region
      %171 = dma.done [#allocation16], 2048
    $region97: #{tpu_custom_call.1} parent=1 // pred_fallthru
      _
    // Predicated region
    $region98: #{tpu_custom_call.1} parent=1 // pred_check
      _
    $region99: #{tpu_custom_call.1} parent=1 // pred_check_branch
      %173 = sbr.rel (0) target = $region101
    $region100: #{tpu_custom_call.1} parent=1 // pred_region
      %174 = dma.done [#allocation16], 2048
    $region101: #{tpu_custom_call.1} parent=1 // pred_fallthru
      _
    %v175 = vld [vmem:[#allocation3] sm:$0xff]
    %v176 = vld [vmem:[#allocation8] sm:$0xff]
    %v177 = vld [vmem:[#allocation8 + $0x8] sm:$0xff]
    %v178 = vld [vmem:[#allocation8 + $0x10] sm:$0xff]
    %v179 = vld [vmem:[#allocation8 + $0x18] sm:$0xff]
    %v180 = vld [vmem:[#allocation8 + $0x20] sm:$0xff]
    %v181 = vld [vmem:[#allocation8 + $0x28] sm:$0xff]
    %v182 = vld [vmem:[#allocation8 + $0x30] sm:$0xff]
    %v183 = vld [vmem:[#allocation8 + $0x38] sm:$0xff]
    %v184 = vld [vmem:[#allocation8 + $0x40] sm:$0xff]
    %v185 = vld [vmem:[#allocation8 + $0x48] sm:$0xff]
    %v186 = vld [vmem:[#allocation8 + $0x50] sm:$0xff]
    %v187 = vld [vmem:[#allocation8 + $0x58] sm:$0xff]
    %v188 = vld [vmem:[#allocation8 + $0x60] sm:$0xff]
    %v189 = vld [vmem:[#allocation8 + $0x68] sm:$0xff]
    %v190 = vld [vmem:[#allocation8 + $0x70] sm:$0xff]
    %v191 = vld [vmem:[#allocation8 + $0x78] sm:$0xff]
    %v192 = vld [vmem:[%s3] sm:$0x1]
    %v194 = vlaneseq
    %v195 = vshrl.u32 %v194, 7
    %v196 = vsub.s32 0, %v195
    %v197 = vrot.slane %v192, %v196
    %199 = vmatprep.subr.mxu0 0.0
    %200 = vmatpush1.msra.mxu0 %v176
    %201 = vmatprep.subr.mxu0 0.0
    %202 = vmatpush1.msra.mxu0 %v177
    %203 = vmatprep.subr.mxu0 0.0
    %204 = vmatpush1.msra.mxu0 %v178
    %205 = vmatprep.subr.mxu0 0.0
    %206 = vmatpush1.msra.mxu0 %v179
    %207 = vmatprep.subr.mxu0 0.0
    %208 = vmatpush1.msra.mxu0 %v180
    %209 = vmatprep.subr.mxu0 0.0
    %210 = vmatpush1.msra.mxu0 %v181
    %211 = vmatprep.subr.mxu0 0.0
    %212 = vmatpush1.msra.mxu0 %v182
    %213 = vmatprep.subr.mxu0 0.0
    %214 = vmatpush1.msra.mxu0 %v183
    %215 = vmatprep.subr.mxu0 0.0
    %216 = vmatpush1.msra.mxu0 %v184
    %217 = vmatprep.subr.mxu0 0.0
    %218 = vmatpush1.msra.mxu0 %v185
    %219 = vmatprep.subr.mxu0 0.0
    %220 = vmatpush1.msra.mxu0 %v186
    %221 = vmatprep.subr.mxu0 0.0
    %222 = vmatpush1.msra.mxu0 %v187
    %223 = vmatprep.subr.mxu0 0.0
    %224 = vmatpush1.msra.mxu0 %v188
    %225 = vmatprep.subr.mxu0 0.0
    %226 = vmatpush1.msra.mxu0 %v189
    %227 = vmatprep.subr.mxu0 0.0
    %228 = vmatpush1.msra.mxu0 %v190
    %229 = vmatprep.subr.mxu0 0.0
    %230 = vmatpush1.msra.mxu0 %v191
    %231 = vmatprep.subr.mxu0 0.0
    %232 = vmatpush1.msra.mxu0 0.0
    %233 = vmatprep.subr.mxu0 0.0
    %234 = vmatpush1.msra.mxu0 0.0
    %235 = vmatprep.subr.mxu0 0.0
    %236 = vmatpush1.msra.mxu0 0.0
    %237 = vmatprep.subr.mxu0 0.0
    %238 = vmatpush1.msra.mxu0 0.0
    %239 = vmatprep.subr.mxu0 0.0
    %240 = vmatpush1.msra.mxu0 0.0
    %241 = vmatprep.subr.mxu0 0.0
    %242 = vmatpush1.msra.mxu0 0.0
    %243 = vmatprep.subr.mxu0 0.0
    %244 = vmatpush1.msra.mxu0 0.0
    %245 = vmatprep.subr.mxu0 0.0
    %246 = vmatpush1.msra.mxu0 0.0
    %247 = vmatprep.subr.mxu0 0.0
    %248 = vmatpush1.msra.mxu0 0.0
    %249 = vmatprep.subr.mxu0 0.0
    %250 = vmatpush1.msra.mxu0 0.0
    %251 = vmatprep.subr.mxu0 0.0
    %252 = vmatpush1.msra.mxu0 0.0
    %253 = vmatprep.subr.mxu0 0.0
    %254 = vmatpush1.msra.mxu0 0.0
    %255 = vmatprep.subr.mxu0 0.0
    %256 = vmatpush1.msra.mxu0 0.0
    %257 = vmatprep.subr.mxu0 0.0
    %258 = vmatpush1.msra.mxu0 0.0
    %259 = vmatprep.subr.mxu0 0.0
    %260 = vmatpush1.msra.mxu0 0.0
    %261 = vmatprep.subr.mxu0 0.0
    %262 = vmatpush1.msra.mxu0 0.0
    %263 = vmatprep.mubr.f32.mxu0 0.0
    %264 = vmatmul.mubr.f32.gmra.mrb[0].mxu0 %v175
    %v265 = vpop.f32.mrb[0].mxu0
    %v266 = vadd.f32 %v197, %v265
    %v267 = vpop.f32.mrb[0].mxu0
    %268 = vdwg.mxu0
    %269 = vst [vmem:[#allocation2] sm:$0xff] %v266
    %v270 = vld [vmem:[#allocation6] sm:$0xff]
    %v271 = vld [vmem:[#allocation9] sm:$0xff]
    %v272 = vld [vmem:[#allocation9 + $0x8] sm:$0xff]
    %v273 = vld [vmem:[#allocation9 + $0x10] sm:$0xff]
    %v274 = vld [vmem:[#allocation9 + $0x18] sm:$0xff]
    %v275 = vld [vmem:[#allocation9 + $0x20] sm:$0xff]
    %v276 = vld [vmem:[#allocation9 + $0x28] sm:$0xff]
    %v277 = vld [vmem:[#allocation9 + $0x30] sm:$0xff]
    %v278 = vld [vmem:[#allocation9 + $0x38] sm:$0xff]
    %v279 = vld [vmem:[#allocation9 + $0x40] sm:$0xff]
    %v280 = vld [vmem:[#allocation9 + $0x48] sm:$0xff]
    %v281 = vld [vmem:[#allocation9 + $0x50] sm:$0xff]
    %v282 = vld [vmem:[#allocation9 + $0x58] sm:$0xff]
    %v283 = vld [vmem:[#allocation9 + $0x60] sm:$0xff]
    %v284 = vld [vmem:[#allocation9 + $0x68] sm:$0xff]
    %v285 = vld [vmem:[#allocation9 + $0x70] sm:$0xff]
    %v286 = vld [vmem:[#allocation9 + $0x78] sm:$0xff]
    %v287 = vld [vmem:[%s5] sm:$0x1]
    %v289 = vlaneseq
    %v290 = vshrl.u32 %v289, 7
    %v291 = vsub.s32 0, %v290
    %v292 = vrot.slane %v287, %v291
    %294 = vmatprep.subr.mxu0 0.0
    %295 = vmatpush1.msra.mxu0 %v271
    %296 = vmatprep.subr.mxu0 0.0
    %297 = vmatpush1.msra.mxu0 %v272
    %298 = vmatprep.subr.mxu0 0.0
    %299 = vmatpush1.msra.mxu0 %v273
    %300 = vmatprep.subr.mxu0 0.0
    %301 = vmatpush1.msra.mxu0 %v274
    %302 = vmatprep.subr.mxu0 0.0
    %303 = vmatpush1.msra.mxu0 %v275
    %304 = vmatprep.subr.mxu0 0.0
    %305 = vmatpush1.msra.mxu0 %v276
    %306 = vmatprep.subr.mxu0 0.0
    %307 = vmatpush1.msra.mxu0 %v277
    %308 = vmatprep.subr.mxu0 0.0
    %309 = vmatpush1.msra.mxu0 %v278
    %310 = vmatprep.subr.mxu0 0.0
    %311 = vmatpush1.msra.mxu0 %v279
    %312 = vmatprep.subr.mxu0 0.0
    %313 = vmatpush1.msra.mxu0 %v280
    %314 = vmatprep.subr.mxu0 0.0
    %315 = vmatpush1.msra.mxu0 %v281
    %316 = vmatprep.subr.mxu0 0.0
    %317 = vmatpush1.msra.mxu0 %v282
    %318 = vmatprep.subr.mxu0 0.0
    %319 = vmatpush1.msra.mxu0 %v283
    %320 = vmatprep.subr.mxu0 0.0
    %321 = vmatpush1.msra.mxu0 %v284
    %322 = vmatprep.subr.mxu0 0.0
    %323 = vmatpush1.msra.mxu0 %v285
    %324 = vmatprep.subr.mxu0 0.0
    %325 = vmatpush1.msra.mxu0 %v286
    %326 = vmatprep.subr.mxu0 0.0
    %327 = vmatpush1.msra.mxu0 0.0
    %328 = vmatprep.subr.mxu0 0.0
    %329 = vmatpush1.msra.mxu0 0.0
    %330 = vmatprep.subr.mxu0 0.0
    %331 = vmatpush1.msra.mxu0 0.0
    %332 = vmatprep.subr.mxu0 0.0
    %333 = vmatpush1.msra.mxu0 0.0
    %334 = vmatprep.subr.mxu0 0.0
    %335 = vmatpush1.msra.mxu0 0.0
    %336 = vmatprep.subr.mxu0 0.0
    %337 = vmatpush1.msra.mxu0 0.0
    %338 = vmatprep.subr.mxu0 0.0
    %339 = vmatpush1.msra.mxu0 0.0
    %340 = vmatprep.subr.mxu0 0.0
    %341 = vmatpush1.msra.mxu0 0.0
    %342 = vmatprep.subr.mxu0 0.0
    %343 = vmatpush1.msra.mxu0 0.0
    %344 = vmatprep.subr.mxu0 0.0
    %345 = vmatpush1.msra.mxu0 0.0
    %346 = vmatprep.subr.mxu0 0.0
    %347 = vmatpush1.msra.mxu0 0.0
    %348 = vmatprep.subr.mxu0 0.0
    %349 = vmatpush1.msra.mxu0 0.0
    %350 = vmatprep.subr.mxu0 0.0
    %351 = vmatpush1.msra.mxu0 0.0
    %352 = vmatprep.subr.mxu0 0.0
    %353 = vmatpush1.msra.mxu0 0.0
    %354 = vmatprep.subr.mxu0 0.0
    %355 = vmatpush1.msra.mxu0 0.0
    %356 = vmatprep.subr.mxu0 0.0
    %357 = vmatpush1.msra.mxu0 0.0
    %358 = vmatprep.mubr.f32.mxu0 0.0
    %359 = vmatmul.mubr.f32.gmra.mrb[0].mxu0 %v270
    %v360 = vpop.f32.mrb[0].mxu0
    %v361 = vadd.f32 %v292, %v360
    %v362 = vpop.f32.mrb[0].mxu0
    %363 = vdwg.mxu0
    %v364 = vmax.f32 %v361, 0.0
    %v365 = vld [vmem:[#allocation11] sm:$0xff]
    %v366 = vld [vmem:[#allocation11 + $0x8] sm:$0xff]
    %v367 = vld [vmem:[#allocation11 + $0x10] sm:$0xff]
    %v368 = vld [vmem:[#allocation11 + $0x18] sm:$0xff]
    %v369 = vld [vmem:[#allocation11 + $0x20] sm:$0xff]
    %v370 = vld [vmem:[#allocation11 + $0x28] sm:$0xff]
    %v371 = vld [vmem:[#allocation11 + $0x30] sm:$0xff]
    %v372 = vld [vmem:[#allocation11 + $0x38] sm:$0xff]
    %v373 = vld [vmem:[#allocation11 + $0x40] sm:$0xff]
    %v374 = vld [vmem:[#allocation11 + $0x48] sm:$0xff]
    %v375 = vld [vmem:[#allocation11 + $0x50] sm:$0xff]
    %v376 = vld [vmem:[#allocation11 + $0x58] sm:$0xff]
    %v377 = vld [vmem:[#allocation11 + $0x60] sm:$0xff]
    %v378 = vld [vmem:[#allocation11 + $0x68] sm:$0xff]
    %v379 = vld [vmem:[#allocation11 + $0x70] sm:$0xff]
    %v380 = vld [vmem:[#allocation11 + $0x78] sm:$0xff]
    %v381 = vld [vmem:[%s7] sm:$0x1]
    %v383 = vlaneseq
    %v384 = vshrl.u32 %v383, 7
    %v385 = vsub.s32 0, %v384
    %v386 = vrot.slane %v381, %v385
    %388 = vmatprep.subr.mxu0 0.0
    %389 = vmatpush1.msra.mxu0 %v365
    %390 = vmatprep.subr.mxu0 0.0
    %391 = vmatpush1.msra.mxu0 %v366
    %392 = vmatprep.subr.mxu0 0.0
    %393 = vmatpush1.msra.mxu0 %v367
    %394 = vmatprep.subr.mxu0 0.0
    %395 = vmatpush1.msra.mxu0 %v368
    %396 = vmatprep.subr.mxu0 0.0
    %397 = vmatpush1.msra.mxu0 %v369
    %398 = vmatprep.subr.mxu0 0.0
    %399 = vmatpush1.msra.mxu0 %v370
    %400 = vmatprep.subr.mxu0 0.0
    %401 = vmatpush1.msra.mxu0 %v371
    %402 = vmatprep.subr.mxu0 0.0
    %403 = vmatpush1.msra.mxu0 %v372
    %404 = vmatprep.subr.mxu0 0.0
    %405 = vmatpush1.msra.mxu0 %v373
    %406 = vmatprep.subr.mxu0 0.0
    %407 = vmatpush1.msra.mxu0 %v374
    %408 = vmatprep.subr.mxu0 0.0
    %409 = vmatpush1.msra.mxu0 %v375
    %410 = vmatprep.subr.mxu0 0.0
    %411 = vmatpush1.msra.mxu0 %v376
    %412 = vmatprep.subr.mxu0 0.0
    %413 = vmatpush1.msra.mxu0 %v377
    %414 = vmatprep.subr.mxu0 0.0
    %415 = vmatpush1.msra.mxu0 %v378
    %416 = vmatprep.subr.mxu0 0.0
    %417 = vmatpush1.msra.mxu0 %v379
    %418 = vmatprep.subr.mxu0 0.0
    %419 = vmatpush1.msra.mxu0 %v380
    %420 = vmatprep.subr.mxu0 0.0
    %421 = vmatpush1.msra.mxu0 0.0
    %422 = vmatprep.subr.mxu0 0.0
    %423 = vmatpush1.msra.mxu0 0.0
    %424 = vmatprep.subr.mxu0 0.0
    %425 = vmatpush1.msra.mxu0 0.0
    %426 = vmatprep.subr.mxu0 0.0
    %427 = vmatpush1.msra.mxu0 0.0
    %428 = vmatprep.subr.mxu0 0.0
    %429 = vmatpush1.msra.mxu0 0.0
    %430 = vmatprep.subr.mxu0 0.0
    %431 = vmatpush1.msra.mxu0 0.0
    %432 = vmatprep.subr.mxu0 0.0
    %433 = vmatpush1.msra.mxu0 0.0
    %434 = vmatprep.subr.mxu0 0.0
    %435 = vmatpush1.msra.mxu0 0.0
    %436 = vmatprep.subr.mxu0 0.0
    %437 = vmatpush1.msra.mxu0 0.0
    %438 = vmatprep.subr.mxu0 0.0
    %439 = vmatpush1.msra.mxu0 0.0
    %440 = vmatprep.subr.mxu0 0.0
    %441 = vmatpush1.msra.mxu0 0.0
    %442 = vmatprep.subr.mxu0 0.0
    %443 = vmatpush1.msra.mxu0 0.0
    %444 = vmatprep.subr.mxu0 0.0
    %445 = vmatpush1.msra.mxu0 0.0
    %446 = vmatprep.subr.mxu0 0.0
    %447 = vmatpush1.msra.mxu0 0.0
    %448 = vmatprep.subr.mxu0 0.0
    %449 = vmatpush1.msra.mxu0 0.0
    %450 = vmatprep.subr.mxu0 0.0
    %451 = vmatpush1.msra.mxu0 0.0
    %452 = vmatprep.mubr.f32.mxu0 0.0
    %453 = vmatmul.mubr.f32.gmra.mrb[0].mxu0 %v364
    %v454 = vpop.f32.mrb[0].mxu0
    %v455 = vadd.f32 %v386, %v454
    %v456 = vpop.f32.mrb[0].mxu0
    %457 = vdwg.mxu0
    %v458 = vmax.f32 %v455, 0.0
    %v459 = vld [vmem:[#allocation12] sm:$0xff]
    %v460 = vld [vmem:[#allocation12 + $0x8] sm:$0xff]
    %v461 = vld [vmem:[#allocation12 + $0x10] sm:$0xff]
    %v462 = vld [vmem:[#allocation12 + $0x18] sm:$0xff]
    %v463 = vld [vmem:[#allocation12 + $0x20] sm:$0xff]
    %v464 = vld [vmem:[#allocation12 + $0x28] sm:$0xff]
    %v465 = vld [vmem:[#allocation12 + $0x30] sm:$0xff]
    %v466 = vld [vmem:[#allocation12 + $0x38] sm:$0xff]
    %v467 = vld [vmem:[#allocation12 + $0x40] sm:$0xff]
    %v468 = vld [vmem:[#allocation12 + $0x48] sm:$0xff]
    %v469 = vld [vmem:[#allocation12 + $0x50] sm:$0xff]
    %v470 = vld [vmem:[#allocation12 + $0x58] sm:$0xff]
    %v471 = vld [vmem:[#allocation12 + $0x60] sm:$0xff]
    %v472 = vld [vmem:[#allocation12 + $0x68] sm:$0xff]
    %v473 = vld [vmem:[#allocation12 + $0x70] sm:$0xff]
    %v474 = vld [vmem:[#allocation12 + $0x78] sm:$0xff]
    %v475 = vld [vmem:[%s9] sm:$0x1]
    %v477 = vlaneseq
    %v478 = vshrl.u32 %v477, 7
    %v479 = vsub.s32 0, %v478
    %v480 = vrot.slane %v475, %v479
    %482 = vmatprep.subr.mxu0 0.0
    %483 = vmatpush1.msra.mxu0 %v459
    %484 = vmatprep.subr.mxu0 0.0
    %485 = vmatpush1.msra.mxu0 %v460
    %486 = vmatprep.subr.mxu0 0.0
    %487 = vmatpush1.msra.mxu0 %v461
    %488 = vmatprep.subr.mxu0 0.0
    %489 = vmatpush1.msra.mxu0 %v462
    %490 = vmatprep.subr.mxu0 0.0
    %491 = vmatpush1.msra.mxu0 %v463
    %492 = vmatprep.subr.mxu0 0.0
    %493 = vmatpush1.msra.mxu0 %v464
    %494 = vmatprep.subr.mxu0 0.0
    %495 = vmatpush1.msra.mxu0 %v465
    %496 = vmatprep.subr.mxu0 0.0
    %497 = vmatpush1.msra.mxu0 %v466
    %498 = vmatprep.subr.mxu0 0.0
    %499 = vmatpush1.msra.mxu0 %v467
    %500 = vmatprep.subr.mxu0 0.0
    %501 = vmatpush1.msra.mxu0 %v468
    %502 = vmatprep.subr.mxu0 0.0
    %503 = vmatpush1.msra.mxu0 %v469
    %504 = vmatprep.subr.mxu0 0.0
    %505 = vmatpush1.msra.mxu0 %v470
    %506 = vmatprep.subr.mxu0 0.0
    %507 = vmatpush1.msra.mxu0 %v471
    %508 = vmatprep.subr.mxu0 0.0
    %509 = vmatpush1.msra.mxu0 %v472
    %510 = vmatprep.subr.mxu0 0.0
    %511 = vmatpush1.msra.mxu0 %v473
    %512 = vmatprep.subr.mxu0 0.0
    %513 = vmatpush1.msra.mxu0 %v474
    %514 = vmatprep.subr.mxu0 0.0
    %515 = vmatpush1.msra.mxu0 0.0
    %516 = vmatprep.subr.mxu0 0.0
    %517 = vmatpush1.msra.mxu0 0.0
    %518 = vmatprep.subr.mxu0 0.0
    %519 = vmatpush1.msra.mxu0 0.0
    %520 = vmatprep.subr.mxu0 0.0
    %521 = vmatpush1.msra.mxu0 0.0
    %522 = vmatprep.subr.mxu0 0.0
    %523 = vmatpush1.msra.mxu0 0.0
    %524 = vmatprep.subr.mxu0 0.0
    %525 = vmatpush1.msra.mxu0 0.0
    %526 = vmatprep.subr.mxu0 0.0
    %527 = vmatpush1.msra.mxu0 0.0
    %528 = vmatprep.subr.mxu0 0.0
    %529 = vmatpush1.msra.mxu0 0.0
    %530 = vmatprep.subr.mxu0 0.0
    %531 = vmatpush1.msra.mxu0 0.0
    %532 = vmatprep.subr.mxu0 0.0
    %533 = vmatpush1.msra.mxu0 0.0
    %534 = vmatprep.subr.mxu0 0.0
    %535 = vmatpush1.msra.mxu0 0.0
    %536 = vmatprep.subr.mxu0 0.0
    %537 = vmatpush1.msra.mxu0 0.0
    %538 = vmatprep.subr.mxu0 0.0
    %539 = vmatpush1.msra.mxu0 0.0
    %540 = vmatprep.subr.mxu0 0.0
    %541 = vmatpush1.msra.mxu0 0.0
    %542 = vmatprep.subr.mxu0 0.0
    %543 = vmatpush1.msra.mxu0 0.0
    %544 = vmatprep.subr.mxu0 0.0
    %545 = vmatpush1.msra.mxu0 0.0
    %546 = vmatprep.mubr.f32.mxu0 0.0
    %547 = vmatmul.mubr.f32.gmra.mrb[0].mxu0 %v458
    %v548 = vpop.f32.mrb[0].mxu0
    %v549 = vadd.f32 %v480, %v548
    %v550 = vpop.f32.mrb[0].mxu0
    %551 = vdwg.mxu0
    %552 = vst [vmem:[#allocation2 + $0x8] sm:$0xff] %v549
    %v553 = vld [vmem:[#allocation2] sm:$0xff]
    %v554 = vld [vmem:[#allocation2 + $0x8] sm:$0xff]
    %v555 = vld [vmem:[#allocation14] sm:$0xff]
    %v556 = vld [vmem:[#allocation14 + $0x8] sm:$0xff]
    %v557 = vld [vmem:[#allocation14 + $0x10] sm:$0xff]
    %v558 = vld [vmem:[#allocation14 + $0x18] sm:$0xff]
    %v559 = vld [vmem:[#allocation14 + $0x20] sm:$0xff]
    %v560 = vld [vmem:[#allocation14 + $0x28] sm:$0xff]
    %v561 = vld [vmem:[#allocation14 + $0x30] sm:$0xff]
    %v562 = vld [vmem:[#allocation14 + $0x38] sm:$0xff]
    %v563 = vld [vmem:[#allocation14 + $0x40] sm:$0xff]
    %v564 = vld [vmem:[#allocation14 + $0x48] sm:$0xff]
    %v565 = vld [vmem:[#allocation14 + $0x50] sm:$0xff]
    %v566 = vld [vmem:[#allocation14 + $0x58] sm:$0xff]
    %v567 = vld [vmem:[#allocation14 + $0x60] sm:$0xff]
    %v568 = vld [vmem:[#allocation14 + $0x68] sm:$0xff]
    %v569 = vld [vmem:[#allocation14 + $0x70] sm:$0xff]
    %v570 = vld [vmem:[#allocation14 + $0x78] sm:$0xff]
    %v571 = vld [vmem:[%s11] sm:$0x1]
    %v573 = vlaneseq
    %v574 = vshrl.u32 %v573, 7
    %v575 = vsub.s32 0, %v574
    %v576 = vrot.slane %v571, %v575
    %578 = vmatprep.subr.mxu0 0.0
    %579 = vmatpush1.msra.mxu0 %v555
    %580 = vmatprep.subr.mxu0 0.0
    %581 = vmatpush1.msra.mxu0 %v556
    %582 = vmatprep.subr.mxu0 0.0
    %583 = vmatpush1.msra.mxu0 %v557
    %584 = vmatprep.subr.mxu0 0.0
    %585 = vmatpush1.msra.mxu0 %v558
    %586 = vmatprep.subr.mxu0 0.0
    %587 = vmatpush1.msra.mxu0 %v559
    %588 = vmatprep.subr.mxu0 0.0
    %589 = vmatpush1.msra.mxu0 %v560
    %590 = vmatprep.subr.mxu0 0.0
    %591 = vmatpush1.msra.mxu0 %v561
    %592 = vmatprep.subr.mxu0 0.0
    %593 = vmatpush1.msra.mxu0 %v562
    %594 = vmatprep.subr.mxu0 0.0
    %595 = vmatpush1.msra.mxu0 %v563
    %596 = vmatprep.subr.mxu0 0.0
    %597 = vmatpush1.msra.mxu0 %v564
    %598 = vmatprep.subr.mxu0 0.0
    %599 = vmatpush1.msra.mxu0 %v565
    %600 = vmatprep.subr.mxu0 0.0
    %601 = vmatpush1.msra.mxu0 %v566
    %602 = vmatprep.subr.mxu0 0.0
    %603 = vmatpush1.msra.mxu0 %v567
    %604 = vmatprep.subr.mxu0 0.0
    %605 = vmatpush1.msra.mxu0 %v568
    %606 = vmatprep.subr.mxu0 0.0
    %607 = vmatpush1.msra.mxu0 %v569
    %608 = vmatprep.subr.mxu0 0.0
    %609 = vmatpush1.msra.mxu0 %v570
    %610 = vmatprep.subr.mxu0 0.0
    %611 = vmatpush1.msra.mxu0 0.0
    %612 = vmatprep.subr.mxu0 0.0
    %613 = vmatpush1.msra.mxu0 0.0
    %614 = vmatprep.subr.mxu0 0.0
    %615 = vmatpush1.msra.mxu0 0.0
    %616 = vmatprep.subr.mxu0 0.0
    %617 = vmatpush1.msra.mxu0 0.0
    %618 = vmatprep.subr.mxu0 0.0
    %619 = vmatpush1.msra.mxu0 0.0
    %620 = vmatprep.subr.mxu0 0.0
    %621 = vmatpush1.msra.mxu0 0.0
    %622 = vmatprep.subr.mxu0 0.0
    %623 = vmatpush1.msra.mxu0 0.0
    %624 = vmatprep.subr.mxu0 0.0
    %625 = vmatpush1.msra.mxu0 0.0
    %626 = vmatprep.subr.mxu0 0.0
    %627 = vmatpush1.msra.mxu0 0.0
    %628 = vmatprep.subr.mxu0 0.0
    %629 = vmatpush1.msra.mxu0 0.0
    %630 = vmatprep.subr.mxu0 0.0
    %631 = vmatpush1.msra.mxu0 0.0
    %632 = vmatprep.subr.mxu0 0.0
    %633 = vmatpush1.msra.mxu0 0.0
    %634 = vmatprep.subr.mxu0 0.0
    %635 = vmatpush1.msra.mxu0 0.0
    %636 = vmatprep.subr.mxu0 0.0
    %637 = vmatpush1.msra.mxu0 0.0
    %638 = vmatprep.subr.mxu0 0.0
    %639 = vmatpush1.msra.mxu0 0.0
    %640 = vmatprep.subr.mxu0 0.0
    %641 = vmatpush1.msra.mxu0 0.0
    %642 = vmatprep.mubr.f32.mxu0 0.0
    %643 = vmatmul.mubr.f32.gmra.mrb[0].mxu0 %v553
    %v644 = vpop.f32.mrb[0].mxu0
    %v645 = vadd.f32 %v576, %v644
    %v646 = vpop.f32.mrb[0].mxu0
    %647 = vmatprep.mubr.f32.mxu0 0.0
    %648 = vmatmul.mubr.f32.gmra.mrb[0].mxu0 %v554
    %v649 = vpop.f32.mrb[0].mxu0
    %v650 = vadd.f32 %v576, %v649
    %v651 = vpop.f32.mrb[0].mxu0
    %652 = vdwg.mxu0
    %v653 = vmax.f32 %v645, 0.0
    %v654 = vmax.f32 %v650, 0.0
    %v655 = vld [vmem:[#allocation15] sm:$0xff]
    %v656 = vld [vmem:[#allocation15 + $0x8] sm:$0xff]
    %v657 = vld [vmem:[#allocation15 + $0x10] sm:$0xff]
    %v658 = vld [vmem:[#allocation15 + $0x18] sm:$0xff]
    %v659 = vld [vmem:[#allocation15 + $0x20] sm:$0xff]
    %v660 = vld [vmem:[#allocation15 + $0x28] sm:$0xff]
    %v661 = vld [vmem:[#allocation15 + $0x30] sm:$0xff]
    %v662 = vld [vmem:[#allocation15 + $0x38] sm:$0xff]
    %v663 = vld [vmem:[#allocation15 + $0x40] sm:$0xff]
    %v664 = vld [vmem:[#allocation15 + $0x48] sm:$0xff]
    %v665 = vld [vmem:[#allocation15 + $0x50] sm:$0xff]
    %v666 = vld [vmem:[#allocation15 + $0x58] sm:$0xff]
    %v667 = vld [vmem:[#allocation15 + $0x60] sm:$0xff]
    %v668 = vld [vmem:[#allocation15 + $0x68] sm:$0xff]
    %v669 = vld [vmem:[#allocation15 + $0x70] sm:$0xff]
    %v670 = vld [vmem:[#allocation15 + $0x78] sm:$0xff]
    %v671 = vld [vmem:[%s13] sm:$0x1]
    %v673 = vlaneseq
    %v674 = vshrl.u32 %v673, 7
    %v675 = vsub.s32 0, %v674
    %v676 = vrot.slane %v671, %v675
    %678 = vmatprep.subr.mxu0 0.0
    %679 = vmatpush1.msra.mxu0 %v655
    %680 = vmatprep.subr.mxu0 0.0
    %681 = vmatpush1.msra.mxu0 %v656
    %682 = vmatprep.subr.mxu0 0.0
    %683 = vmatpush1.msra.mxu0 %v657
    %684 = vmatprep.subr.mxu0 0.0
    %685 = vmatpush1.msra.mxu0 %v658
    %686 = vmatprep.subr.mxu0 0.0
    %687 = vmatpush1.msra.mxu0 %v659
    %688 = vmatprep.subr.mxu0 0.0
    %689 = vmatpush1.msra.mxu0 %v660
    %690 = vmatprep.subr.mxu0 0.0
    %691 = vmatpush1.msra.mxu0 %v661
    %692 = vmatprep.subr.mxu0 0.0
    %693 = vmatpush1.msra.mxu0 %v662
    %694 = vmatprep.subr.mxu0 0.0
    %695 = vmatpush1.msra.mxu0 %v663
    %696 = vmatprep.subr.mxu0 0.0
    %697 = vmatpush1.msra.mxu0 %v664
    %698 = vmatprep.subr.mxu0 0.0
    %699 = vmatpush1.msra.mxu0 %v665
    %700 = vmatprep.subr.mxu0 0.0
    %701 = vmatpush1.msra.mxu0 %v666
    %702 = vmatprep.subr.mxu0 0.0
    %703 = vmatpush1.msra.mxu0 %v667
    %704 = vmatprep.subr.mxu0 0.0
    %705 = vmatpush1.msra.mxu0 %v668
    %706 = vmatprep.subr.mxu0 0.0
    %707 = vmatpush1.msra.mxu0 %v669
    %708 = vmatprep.subr.mxu0 0.0
    %709 = vmatpush1.msra.mxu0 %v670
    %710 = vmatprep.subr.mxu0 0.0
    %711 = vmatpush1.msra.mxu0 0.0
    %712 = vmatprep.subr.mxu0 0.0
    %713 = vmatpush1.msra.mxu0 0.0
    %714 = vmatprep.subr.mxu0 0.0
    %715 = vmatpush1.msra.mxu0 0.0
    %716 = vmatprep.subr.mxu0 0.0
    %717 = vmatpush1.msra.mxu0 0.0
    %718 = vmatprep.subr.mxu0 0.0
    %719 = vmatpush1.msra.mxu0 0.0
    %720 = vmatprep.subr.mxu0 0.0
    %721 = vmatpush1.msra.mxu0 0.0
    %722 = vmatprep.subr.mxu0 0.0
    %723 = vmatpush1.msra.mxu0 0.0
    %724 = vmatprep.subr.mxu0 0.0
    %725 = vmatpush1.msra.mxu0 0.0
    %726 = vmatprep.subr.mxu0 0.0
    %727 = vmatpush1.msra.mxu0 0.0
    %728 = vmatprep.subr.mxu0 0.0
    %729 = vmatpush1.msra.mxu0 0.0
    %730 = vmatprep.subr.mxu0 0.0
    %731 = vmatpush1.msra.mxu0 0.0
    %732 = vmatprep.subr.mxu0 0.0
    %733 = vmatpush1.msra.mxu0 0.0
    %734 = vmatprep.subr.mxu0 0.0
    %735 = vmatpush1.msra.mxu0 0.0
    %736 = vmatprep.subr.mxu0 0.0
    %737 = vmatpush1.msra.mxu0 0.0
    %738 = vmatprep.subr.mxu0 0.0
    %739 = vmatpush1.msra.mxu0 0.0
    %740 = vmatprep.subr.mxu0 0.0
    %741 = vmatpush1.msra.mxu0 0.0
    %742 = vmatprep.mubr.f32.mxu0 0.0
    %743 = vmatmul.mubr.f32.gmra.mrb[0].mxu0 %v653
    %v744 = vpop.f32.mrb[0].mxu0
    %v745 = vadd.f32 %v676, %v744
    %v746 = vpop.f32.mrb[0].mxu0
    %747 = vmatprep.mubr.f32.mxu0 0.0
    %748 = vmatmul.mubr.f32.gmra.mrb[0].mxu0 %v654
    %v749 = vpop.f32.mrb[0].mxu0
    %v750 = vadd.f32 %v676, %v749
    %v751 = vpop.f32.mrb[0].mxu0
    %752 = vdwg.mxu0
    %v753 = vmax.f32 %v745, 0.0
    %v754 = vmax.f32 %v750, 0.0
    %v755 = vld [vmem:[#allocation17] sm:$0xff]
    %v756 = vld [vmem:[#allocation17 + $0x8] sm:$0xff]
    %v757 = vld [vmem:[#allocation17 + $0x10] sm:$0xff]
    %v758 = vld [vmem:[#allocation17 + $0x18] sm:$0xff]
    %v759 = vld [vmem:[#allocation17 + $0x20] sm:$0xff]
    %v760 = vld [vmem:[#allocation17 + $0x28] sm:$0xff]
    %v761 = vld [vmem:[#allocation17 + $0x30] sm:$0xff]
    %v762 = vld [vmem:[#allocation17 + $0x38] sm:$0xff]
    %v763 = vld [vmem:[#allocation17 + $0x40] sm:$0xff]
    %v764 = vld [vmem:[#allocation17 + $0x48] sm:$0xff]
    %v765 = vld [vmem:[#allocation17 + $0x50] sm:$0xff]
    %v766 = vld [vmem:[#allocation17 + $0x58] sm:$0xff]
    %v767 = vld [vmem:[#allocation17 + $0x60] sm:$0xff]
    %v768 = vld [vmem:[#allocation17 + $0x68] sm:$0xff]
    %v769 = vld [vmem:[#allocation17 + $0x70] sm:$0xff]
    %v770 = vld [vmem:[#allocation17 + $0x78] sm:$0xff]
    %v771 = vld [vmem:[%s15] sm:$0x1]
    %v773 = vlaneseq
    %v774 = vshrl.u32 %v773, 7
    %v775 = vsub.s32 0, %v774
    %v776 = vrot.slane %v771, %v775
    %778 = vmatprep.subr.mxu0 0.0
    %779 = vmatpush1.msra.mxu0 %v755
    %780 = vmatprep.subr.mxu0 0.0
    %781 = vmatpush1.msra.mxu0 %v756
    %782 = vmatprep.subr.mxu0 0.0
    %783 = vmatpush1.msra.mxu0 %v757
    %784 = vmatprep.subr.mxu0 0.0
    %785 = vmatpush1.msra.mxu0 %v758
    %786 = vmatprep.subr.mxu0 0.0
    %787 = vmatpush1.msra.mxu0 %v759
    %788 = vmatprep.subr.mxu0 0.0
    %789 = vmatpush1.msra.mxu0 %v760
    %790 = vmatprep.subr.mxu0 0.0
    %791 = vmatpush1.msra.mxu0 %v761
    %792 = vmatprep.subr.mxu0 0.0
    %793 = vmatpush1.msra.mxu0 %v762
    %794 = vmatprep.subr.mxu0 0.0
    %795 = vmatpush1.msra.mxu0 %v763
    %796 = vmatprep.subr.mxu0 0.0
    %797 = vmatpush1.msra.mxu0 %v764
    %798 = vmatprep.subr.mxu0 0.0
    %799 = vmatpush1.msra.mxu0 %v765
    %800 = vmatprep.subr.mxu0 0.0
    %801 = vmatpush1.msra.mxu0 %v766
    %802 = vmatprep.subr.mxu0 0.0
    %803 = vmatpush1.msra.mxu0 %v767
    %804 = vmatprep.subr.mxu0 0.0
    %805 = vmatpush1.msra.mxu0 %v768
    %806 = vmatprep.subr.mxu0 0.0
    %807 = vmatpush1.msra.mxu0 %v769
    %808 = vmatprep.subr.mxu0 0.0
    %809 = vmatpush1.msra.mxu0 %v770
    %810 = vmatprep.subr.mxu0 0.0
    %811 = vmatpush1.msra.mxu0 0.0
    %812 = vmatprep.subr.mxu0 0.0
    %813 = vmatpush1.msra.mxu0 0.0
    %814 = vmatprep.subr.mxu0 0.0
    %815 = vmatpush1.msra.mxu0 0.0
    %816 = vmatprep.subr.mxu0 0.0
    %817 = vmatpush1.msra.mxu0 0.0
    %818 = vmatprep.subr.mxu0 0.0
    %819 = vmatpush1.msra.mxu0 0.0
    %820 = vmatprep.subr.mxu0 0.0
    %821 = vmatpush1.msra.mxu0 0.0
    %822 = vmatprep.subr.mxu0 0.0
    %823 = vmatpush1.msra.mxu0 0.0
    %824 = vmatprep.subr.mxu0 0.0
    %825 = vmatpush1.msra.mxu0 0.0
    %826 = vmatprep.subr.mxu0 0.0
    %827 = vmatpush1.msra.mxu0 0.0
    %828 = vmatprep.subr.mxu0 0.0
    %829 = vmatpush1.msra.mxu0 0.0
    %830 = vmatprep.subr.mxu0 0.0
    %831 = vmatpush1.msra.mxu0 0.0
    %832 = vmatprep.subr.mxu0 0.0
    %833 = vmatpush1.msra.mxu0 0.0
    %834 = vmatprep.subr.mxu0 0.0
    %835 = vmatpush1.msra.mxu0 0.0
    %836 = vmatprep.subr.mxu0 0.0
    %837 = vmatpush1.msra.mxu0 0.0
    %838 = vmatprep.subr.mxu0 0.0
    %839 = vmatpush1.msra.mxu0 0.0
    %840 = vmatprep.subr.mxu0 0.0
    %841 = vmatpush1.msra.mxu0 0.0
    %842 = vmatprep.mubr.f32.mxu0 0.0
    %843 = vmatmul.mubr.f32.gmra.mrb[0].mxu0 %v753
    %v844 = vpop.f32.mrb[0].mxu0
    %v845 = vadd.f32 %v776, %v844
    %v846 = vpop.f32.mrb[0].mxu0
    %847 = vmatprep.mubr.f32.mxu0 0.0
    %848 = vmatmul.mubr.f32.gmra.mrb[0].mxu0 %v754
    %v849 = vpop.f32.mrb[0].mxu0
    %v850 = vadd.f32 %v776, %v849
    %v851 = vpop.f32.mrb[0].mxu0
    %852 = vdwg.mxu0
    %853 = vst [vmem:[#allocation18] sm:$0xff] %v845
    %854 = vst [vmem:[#allocation19] sm:$0xff] %v850
    // Predicated region
    $region102: #{tpu_custom_call.1} parent=1 // pred_check
      _
    $region103: #{tpu_custom_call.1} parent=1 // pred_check_branch
      %856 = sbr.rel (0) target = $region105
    $region104: #{tpu_custom_call.1} parent=1 // pred_region
      %s858 = ssub.s32 128, 128
      %859 = vsyncadd [#allocation5], %s858
      %s861 = sshll.u32 [#allocation18], 4
      %s862 = int_to_ptr.vmem [resolvable:$true] %s861
      %864 = dma.vmem_to_hbm [thread:$0]  %s862, 128, %s16, [#allocation5]
    $region105: #{tpu_custom_call.1} parent=1 // pred_fallthru
      _
    // Predicated region
    $region106: #{tpu_custom_call.1} parent=1 // pred_check
      _
    $region107: #{tpu_custom_call.1} parent=1 // pred_check_branch
      %866 = sbr.rel (0) target = $region109
    $region108: #{tpu_custom_call.1} parent=1 // pred_region
      %s868 = ssub.s32 128, 128
      %869 = vsyncadd [#allocation20], %s868
      %s871 = sshll.u32 [#allocation19], 4
      %s872 = int_to_ptr.vmem [resolvable:$true] %s871
      %874 = dma.vmem_to_hbm [thread:$0]  %s872, 128, %s17, [#allocation20]
    $region109: #{tpu_custom_call.1} parent=1 // pred_fallthru
      _
    // Predicated region
    $region110: #{tpu_custom_call.1} parent=1 // pred_check
      _
    $region111: #{tpu_custom_call.1} parent=1 // pred_check_branch
      %876 = sbr.rel (0) target = $region113
    $region112: #{tpu_custom_call.1} parent=1 // pred_region
      %877 = dma.done [#allocation5], 128
    $region113: #{tpu_custom_call.1} parent=1 // pred_fallthru
      _
    // Predicated region
    $region114: #{tpu_custom_call.1} parent=1 // pred_check
      _
    $region115: #{tpu_custom_call.1} parent=1 // pred_check_branch
      %879 = sbr.rel (0) target = $region117
    $region116: #{tpu_custom_call.1} parent=1 // pred_region
      %880 = dma.done [#allocation20], 128
    $region117: #{tpu_custom_call.1} parent=1 // pred_fallthru
      _
    %881 = vsyncpa [#allocation4], 1
    %882 = vsyncpa [#allocation7], 1
    %883 = vsyncpa [#allocation10], 1
    %884 = vsyncpa [#allocation13], 1
    %885 = vsyncpa [#allocation16], 1
    %886 = vsyncpa [#allocation5], 1
    %887 = vsyncpa [#allocation20], 1

</llo_original>
